<compile_context>
chip_gen: v7x
topology: tpu7x:2x2x1
jax: 0.10.0
libtpu: 0.0.40
codegen_flags: <defaults>
</compile_context>

<pallas_src>
import math
import jax
import jax.numpy as jnp
from jax import lax
from jax.experimental import pallas as pl
from jax.experimental.pallas import tpu as pltpu


# ----------------------------------------------------------------------------
# Fused kernel
# ----------------------------------------------------------------------------
def gpg2_fused_kernel(
    cols2_ref,                       # (1, 9*c2, HW2)   bf16, channel-major im2col
    cols3_ref, cols4_ref, cols5_ref, # (1, HW_l, 9*c_l) bf16, HW-major im2col
    w2_ref, w3_ref, w4_ref, w5_ref,  # (width, 9*c_l)   bf16, BN scale folded
    cbias_ref,                       # (4, width, 1)    f32, [b2, b3, b4, b5]
    m3_ref, m4_ref, m5_ref,          # (HW_l, HW2)      bf16, bilinear matrices
    fc1_ref, fc2_ref,                # (red, C4), (C4, red) bf16, torch Linear layout
    wout_ref,                        # (4, width, width) bf16, [conv5,conv4,conv3,conv2]
    obias_ref,                       # (width, 1)       f32
    o_ref,                           # (1, width, HW2)  f32  (NCHW flattened)
):
    f32 = jnp.float32
    bf16 = jnp.bfloat16

    # ---- level 2: channel-major im2col (HW2=256 on lanes), single matmul
    f2 = jnp.dot(w2_ref[...], cols2_ref[0], preferred_element_type=f32)
    f2 = jnp.maximum(f2 + cbias_ref[0], 0.0)                      # (W, HW2)

    # ---- levels 3/4/5: HW-major im2col (lane-dense K), conv as A @ B^T
    def conv_small(cols_ref, w_ref, lvl):
        # (W, K) . (HW_l, K)^T -> (W, HW_l), channel-major result, no transpose
        f = lax.dot_general(w_ref[...], cols_ref[0],
                            dimension_numbers=(((1,), (1,)), ((), ())),
                            preferred_element_type=f32)
        return jnp.maximum(f + cbias_ref[lvl], 0.0)

    f3 = conv_small(cols3_ref, w3_ref, 1)                         # (W, HW3)
    f4 = conv_small(cols4_ref, w4_ref, 2)                         # (W, HW4)
    f5 = conv_small(cols5_ref, w5_ref, 3)                         # (W, HW5)

    # ---- bilinear upsample (align_corners=True) as bf16 matmuls
    f3u = jnp.dot(f3.astype(bf16), m3_ref[...], preferred_element_type=f32)
    f4u = jnp.dot(f4.astype(bf16), m4_ref[...], preferred_element_type=f32)
    f5u = jnp.dot(f5.astype(bf16), m5_ref[...], preferred_element_type=f32)

    # ---- SELayer gate from per-level means (no 4W x HW2 concat buffer)
    # channel order matches torch.cat([conv5, conv4, conv3, conv2], dim=1)
    pooled = jnp.concatenate(
        [jnp.mean(f, axis=1, keepdims=True) for f in (f5u, f4u, f3u, f2)],
        axis=0)                                                   # (C4, 1) f32
    h = jnp.maximum(jnp.dot(fc1_ref[...], pooled.astype(bf16),
                            preferred_element_type=f32), 0.0)     # (red, 1)
    gate = jax.nn.sigmoid(jnp.dot(fc2_ref[...], h.astype(bf16),
                                  preferred_element_type=f32))    # (C4, 1)

    # ---- conv_out (1x1 + BN) as four accumulating matmuls; SE gate folded per level
    W = f2.shape[0]
    acc = jnp.zeros_like(f2)
    for lvl, f in enumerate((f5u, f4u, f3u, f2)):
        fs = (f * gate[lvl * W:(lvl + 1) * W, :]).astype(bf16)    # (W, HW2)
        acc = acc + jnp.dot(wout_ref[lvl], fs, preferred_element_type=f32)
    o_ref[0] = (acc + obias_ref[...]).astype(o_ref.dtype)         # lane-dense store


# ----------------------------------------------------------------------------
# Host-side glue
# ----------------------------------------------------------------------------
def im2col_3x3_cm(x):
    """x: (B, C, H, W) -> (B, 9*C, H*W); K ordering = (dy, dx, c)."""
    B, C, H, W = x.shape
    xp = jnp.pad(x, ((0, 0), (0, 0), (1, 1), (1, 1)))
    taps = [xp[:, :, dy:dy + H, dx:dx + W].reshape(B, C, H * W)
            for dy in range(3) for dx in range(3)]
    return jnp.concatenate(taps, axis=1)


def im2col_3x3_hw(x):
    """x: (B, C, H, W) -> (B, H*W, 9*C); lane-dense K for the small levels."""
    return jnp.transpose(im2col_3x3_cm(x), (0, 2, 1))


def _interp_matrix_ac(n_out, n_in):
    """1-D bilinear interpolation matrix, align_corners=True."""
    if n_in == 1:
        return jnp.ones((n_out, 1), jnp.float32)
    if n_out == 1:
        m = jnp.zeros((1, n_in), jnp.float32)
        return m.at[0, 0].set(1.0)
    pos = jnp.arange(n_out, dtype=jnp.float32) * (n_in - 1) / (n_out - 1)
    lo = jnp.clip(jnp.floor(pos).astype(jnp.int32), 0, n_in - 2)
    frac = pos - lo.astype(jnp.float32)
    m = jnp.zeros((n_out, n_in), jnp.float32)
    rows = jnp.arange(n_out)
    m = m.at[rows, lo].add(1.0 - frac)
    m = m.at[rows, lo + 1].add(frac)
    return m


def bilinear_matrix_t(in_h, in_w, out_h, out_w):
    """(HW_in, HW_out) matrix M^T with f_up = f_cm @ M^T (channel-major), bf16."""
    m = jnp.kron(_interp_matrix_ac(out_h, in_h), _interp_matrix_ac(out_w, in_w))
    return m.T.astype(jnp.bfloat16)


def gpg2_forward(x2, x3, x4, x5, p, *, eps=1e-5, interpret=False):
    """Inputs NCHW: x2 (B,c2,H,W) ... x5 (B,c5,H/8,W/8). Output NCHW (B,width,H,W)."""
    B, _, H2, W2 = x2.shape
    HW2 = H2 * W2
    width = p['conv2'][0].shape[0]
    C4 = 4 * width

    def fold_conv(conv_p):
        w, g, b, m, v = conv_p                      # w: (Cout, kH, kW, Cin)
        cout = w.shape[0]
        K = w.shape[1] * w.shape[2] * w.shape[3]
        inv_std = g / jnp.sqrt(v + eps)
        wf = (w.reshape(cout, K) * inv_std[:, None]).astype(jnp.bfloat16)
        bias = (b - m * inv_std).astype(jnp.float32)
        return wf, bias

    w2f, b2 = fold_conv(p['conv2'])
    w3f, b3 = fold_conv(p['conv3'])
    w4f, b4 = fold_conv(p['conv4'])
    w5f, b5 = fold_conv(p['conv5'])
    cbias = jnp.stack([b2, b3, b4, b5], axis=0)[:, :, None]       # (4, W, 1)

    # level 2 channel-major (lane-dense HW2); levels 3/4/5 HW-major (lane-dense K)
    cols2 = im2col_3x3_cm(x2).astype(jnp.bfloat16)                # (B, 9c2, HW2)
    cols3 = im2col_3x3_hw(x3).astype(jnp.bfloat16)                # (B, HW3, 9c3)
    cols4 = im2col_3x3_hw(x4).astype(jnp.bfloat16)                # (B, HW4, 9c4)
    cols5 = im2col_3x3_hw(x5).astype(jnp.bfloat16)                # (B, HW5, 9c5)

    m3 = bilinear_matrix_t(x3.shape[2], x3.shape[3], H2, W2)      # (HW3, HW2) bf16
    m4 = bilinear_matrix_t(x4.shape[2], x4.shape[3], H2, W2)      # (HW4, HW2) bf16
    m5 = bilinear_matrix_t(x5.shape[2], x5.shape[3], H2, W2)      # (HW5, HW2) bf16

    g, b, m, v = p['bn_out']
    inv_std = g / jnp.sqrt(v + eps)
    woutf = p['wout'] * inv_std[:, None]                          # (W, C4) f32
    # split into per-level blocks matching concat order [conv5, conv4, conv3, conv2]
    woutS = jnp.transpose(woutf.reshape(width, 4, width), (1, 0, 2)).astype(jnp.bfloat16)
    obias = ((b - m * inv_std)[:, None]).astype(jnp.float32)      # (W, 1)

    fc1 = p['fc1'].astype(jnp.bfloat16)                           # (red, C4)
    fc2 = p['fc2'].astype(jnp.bfloat16)                           # (C4, red)

    args = (cols2, cols3, cols4, cols5, w2f, w3f, w4f, w5f, cbias,
            m3, m4, m5, fc1, fc2, woutS, obias)

    def batch_spec(a):
        return pl.BlockSpec((1,) + a.shape[1:], lambda bb: (bb, 0, 0))

    def full_spec(a):
        if a.ndim == 2:
            return pl.BlockSpec(a.shape, lambda bb: (0, 0))
        return pl.BlockSpec(a.shape, lambda bb: (0, 0, 0))

    in_specs = ([batch_spec(a) for a in args[:4]]
                + [full_spec(a) for a in args[4:]])

    # Advisory cost estimate for the XLA scheduler.
    lvl_khw = [(9 * x.shape[1], x.shape[2] * x.shape[3]) for x in (x2, x3, x4, x5)]
    conv_flops = 2 * width * sum(k * hw for k, hw in lvl_khw)
    up_flops = 2 * width * HW2 * sum(hw for _, hw in lvl_khw[1:])
    se_flops = 4 * C4 * (C4 // 16)
    out_flops = 2 * width * C4 * HW2
    flops = B * (conv_flops + up_flops + se_flops + out_flops)
    bytes_accessed = (sum(int(a.size) * a.dtype.itemsize for a in args)
                      + B * width * HW2 * 4)
    cost = pl.CostEstimate(flops=int(flops), transcendentals=int(B * C4),
                           bytes_accessed=int(bytes_accessed))

    out = pl.pallas_call(
        gpg2_fused_kernel,
        out_shape=jax.ShapeDtypeStruct((B, width, HW2), jnp.float32),
        grid=(B,),
        in_specs=in_specs,
        out_specs=pl.BlockSpec((1, width, HW2), lambda bb: (bb, 0, 0)),
        compiler_params=pltpu.CompilerParams(
            dimension_semantics=("parallel",),
            vmem_limit_bytes=32 * 1024 * 1024),   # right-sized; actual use ~1 MiB
        cost_estimate=cost,
        interpret=interpret,
    )(*args)
    return out.reshape(B, width, H2, W2)                          # NCHW, like PyTorch


# ----------------------------------------------------------------------------
# Parameter init (deterministic, synthetic; matches the PyTorch init style)
# ----------------------------------------------------------------------------
def init_conv_bn(key, cin, cout, k):
    k1, k2 = jax.random.split(key)
    fan_in = cin * k * k
    bound = math.sqrt(6.0 / fan_in)                               # kaiming-uniform style
    # Weight stored as (Cout, kH, kW, Cin) so .reshape(Cout, k*k*Cin) matches the
    # (dy, dx, c) K-ordering of im2col_3x3_*.
    # (A real torch weight (Cout, Cin, kH, kW) needs .permute(0, 2, 3, 1) first.)
    w = jax.random.uniform(k1, (cout, k, k, cin), jnp.float32, -bound, bound)
    gamma = 1.0 + 0.02 * jax.random.normal(k2, (cout,), jnp.float32)
    beta = jnp.zeros((cout,), jnp.float32)
    mean = jnp.zeros((cout,), jnp.float32)
    var = jnp.ones((cout,), jnp.float32)
    return (w, gamma, beta, mean, var)


def init_gpg2_params(key, in_channels, width):
    keys = jax.random.split(key, 7)
    c2, c3, c4, c5 = in_channels
    C4w = 4 * width
    red = C4w // 16
    params = {
        'conv2': init_conv_bn(keys[0], c2, width, 3),
        'conv3': init_conv_bn(keys[1], c3, width, 3),
        'conv4': init_conv_bn(keys[2], c4, width, 3),
        'conv5': init_conv_bn(keys[3], c5, width, 3),
        # SE MLP weights in torch Linear layout (out_features, in_features), no bias
        'fc1': jax.random.uniform(keys[4], (red, C4w), jnp.float32,
                                  -1.0 / math.sqrt(C4w), 1.0 / math.sqrt(C4w)),
        'fc2': jax.random.uniform(keys[5], (C4w, red), jnp.float32,
                                  -1.0 / math.sqrt(red), 1.0 / math.sqrt(red)),
    }
    # conv_out: 1x1 conv (4*width -> width, no bias) + BN
    w1, g1, b1, m1, v1 = init_conv_bn(keys[6], C4w, width, 1)
    params['wout'] = w1.reshape(width, C4w)
    params['bn_out'] = (g1, b1, m1, v1)
    return params


# ----------------------------------------------------------------------------
if __name__ == "__main__":
    key = jax.random.PRNGKey(0)
    k_params, k2, k3, k4, k5 = jax.random.split(key, 5)

    B = 2
    width = 32
    in_channels = [8, 16, 32, 64]          # [c2, c3, c4, c5]

    # NCHW inputs, matching the PyTorch module's calling convention
    x2 = jax.random.normal(k2, (B, in_channels[0], 16, 16), jnp.float32)
    x3 = jax.random.normal(k3, (B, in_channels[1], 8, 8), jnp.float32)
    x4 = jax.random.normal(k4, (B, in_channels[2], 4, 4), jnp.float32)
    x5 = jax.random.normal(k5, (B, in_channels[3], 2, 2), jnp.float32)

    params = init_gpg2_params(k_params, in_channels, width)

    fwd = jax.jit(gpg2_forward)
    out = jax.block_until_ready(fwd(x2, x3, x4, x5, params))

    assert out.shape == (B, width, 16, 16), out.shape
    assert bool(jnp.all(jnp.isfinite(out)))
    print("KERNEL_OK")
</pallas_src>

<mosaic_0001>
module attributes {stable_mosaic.version = 11 : i64} {
  func.func private @main(%arg0: i32) attributes {dimension_semantics = [#tpu.dimension_semantics<core_parallel>], iteration_bounds = array<i64: 2>, tpu.core_type = #tpu.core_type<sc_scalar_subcore>, window_params = []} {
    return
  }
}

module attributes {stable_mosaic.version = 11 : i64} {
  func.func private @main(%arg0: i32) attributes {dimension_semantics = [#tpu.dimension_semantics<core_parallel>], iteration_bounds = array<i64: 2>, tpu.core_type = #tpu.core_type<sc_scalar_subcore>, window_params = []} {
    return
  }
}

module attributes {stable_mosaic.version = 11 : i64} {
  func.func @gpg2_fused_kernel(%arg0: i32, %arg1: memref<1x72x256xbf16, #tpu.memory_space<vmem>>, %arg2: memref<1x64x144xbf16, #tpu.memory_space<vmem>>, %arg3: memref<1x16x288xbf16, #tpu.memory_space<vmem>>, %arg4: memref<1x4x576xbf16, #tpu.memory_space<vmem>>, %arg5: memref<32x72xbf16, #tpu.memory_space<vmem>>, %arg6: memref<32x144xbf16, #tpu.memory_space<vmem>>, %arg7: memref<32x288xbf16, #tpu.memory_space<vmem>>, %arg8: memref<32x576xbf16, #tpu.memory_space<vmem>>, %arg9: memref<4x32x1xf32, #tpu.memory_space<vmem>>, %arg10: memref<64x256xbf16, #tpu.memory_space<vmem>>, %arg11: memref<16x256xbf16, #tpu.memory_space<vmem>>, %arg12: memref<4x256xbf16, #tpu.memory_space<vmem>>, %arg13: memref<8x128xbf16, #tpu.memory_space<vmem>>, %arg14: memref<128x8xbf16, #tpu.memory_space<vmem>>, %arg15: memref<4x32x32xbf16, #tpu.memory_space<vmem>>, %arg16: memref<32x1xf32, #tpu.memory_space<vmem>>, %arg17: memref<1x32x256xf32, #tpu.memory_space<vmem>>) attributes {dimension_semantics = [#tpu.dimension_semantics<parallel>], iteration_bounds = array<i64: 2>, scalar_prefetch = 0 : i64, scratch_operands = 0 : i64, tpu.core_type = #tpu.core_type<tc>, window_params = [{transform_indices = @transform_0, window_bounds = array<i64: 1, 72, 256>}, {transform_indices = @transform_1, window_bounds = array<i64: 1, 64, 144>}, {transform_indices = @transform_2, window_bounds = array<i64: 1, 16, 288>}, {transform_indices = @transform_3, window_bounds = array<i64: 1, 4, 576>}, {pipeline_mode = #tpu.pipeline_mode<synchronous>, transform_indices = @transform_4, window_bounds = array<i64: 32, 72>}, {pipeline_mode = #tpu.pipeline_mode<synchronous>, transform_indices = @transform_5, window_bounds = array<i64: 32, 144>}, {pipeline_mode = #tpu.pipeline_mode<synchronous>, transform_indices = @transform_6, window_bounds = array<i64: 32, 288>}, {pipeline_mode = #tpu.pipeline_mode<synchronous>, transform_indices = @transform_7, window_bounds = array<i64: 32, 576>}, {pipeline_mode = #tpu.pipeline_mode<synchronous>, transform_indices = @transform_8, window_bounds = array<i64: 4, 32, 1>}, {pipeline_mode = #tpu.pipeline_mode<synchronous>, transform_indices = @transform_9, window_bounds = array<i64: 64, 256>}, {pipeline_mode = #tpu.pipeline_mode<synchronous>, transform_indices = @transform_10, window_bounds = array<i64: 16, 256>}, {pipeline_mode = #tpu.pipeline_mode<synchronous>, transform_indices = @transform_11, window_bounds = array<i64: 4, 256>}, {pipeline_mode = #tpu.pipeline_mode<synchronous>, transform_indices = @transform_12, window_bounds = array<i64: 8, 128>}, {pipeline_mode = #tpu.pipeline_mode<synchronous>, transform_indices = @transform_13, window_bounds = array<i64: 128, 8>}, {pipeline_mode = #tpu.pipeline_mode<synchronous>, transform_indices = @transform_14, window_bounds = array<i64: 4, 32, 32>}, {pipeline_mode = #tpu.pipeline_mode<synchronous>, transform_indices = @transform_15, window_bounds = array<i64: 32, 1>}, {transform_indices = @transform_16, window_bounds = array<i64: 1, 32, 256>}]} {
    %c0 = arith.constant 0 : index
    %c0_0 = arith.constant 0 : index
    %0 = vector.load %arg5[%c0, %c0_0] : memref<32x72xbf16, #tpu.memory_space<vmem>>, vector<32x72xbf16>
    %c0_1 = arith.constant 0 : index
    %c0_2 = arith.constant 0 : index
    %c0_3 = arith.constant 0 : index
    %1 = vector.load %arg1[%c0_1, %c0_2, %c0_3] : memref<1x72x256xbf16, #tpu.memory_space<vmem>>, vector<1x72x256xbf16>
    %2 = vector.shape_cast %1 : vector<1x72x256xbf16> to vector<72x256xbf16>
    %cst = arith.constant dense<0.000000e+00> : vector<32x256xf32>
    %3 = tpu.matmul %0, %2, %cst {dimension_numbers = #tpu.dot_dimension_numbers<[1], [0], [0], [1], [0, 0, 1, 1], [], []>} : vector<32x72xbf16>, vector<72x256xbf16>, vector<32x256xf32> -> vector<32x256xf32>
    %c0_4 = arith.constant 0 : index
    %c0_5 = arith.constant 0 : index
    %c0_6 = arith.constant 0 : index
    %4 = vector.load %arg9[%c0_4, %c0_5, %c0_6] : memref<4x32x1xf32, #tpu.memory_space<vmem>>, vector<1x32x1xf32>
    %5 = vector.shape_cast %4 : vector<1x32x1xf32> to vector<32x1xf32>
    %6 = vector.broadcast %5 : vector<32x1xf32> to vector<32x256xf32>
    %7 = arith.addf %3, %6 : vector<32x256xf32>
    %cst_7 = arith.constant 0.000000e+00 : f32
    %8 = vector.broadcast %cst_7 : f32 to vector<32x256xf32>
    %9 = arith.maximumf %7, %8 : vector<32x256xf32>
    %c0_8 = arith.constant 0 : index
    %c0_9 = arith.constant 0 : index
    %10 = vector.load %arg6[%c0_8, %c0_9] : memref<32x144xbf16, #tpu.memory_space<vmem>>, vector<32x144xbf16>
    %c0_10 = arith.constant 0 : index
    %c0_11 = arith.constant 0 : index
    %c0_12 = arith.constant 0 : index
    %11 = vector.load %arg2[%c0_10, %c0_11, %c0_12] : memref<1x64x144xbf16, #tpu.memory_space<vmem>>, vector<1x64x144xbf16>
    %12 = vector.shape_cast %11 : vector<1x64x144xbf16> to vector<64x144xbf16>
    %cst_13 = arith.constant dense<0.000000e+00> : vector<32x64xf32>
    %13 = tpu.matmul %10, %12, %cst_13 {dimension_numbers = #tpu.dot_dimension_numbers<[1], [1], [0], [0], [0, 0, 1, 0], [], []>} : vector<32x144xbf16>, vector<64x144xbf16>, vector<32x64xf32> -> vector<32x64xf32>
    %c1 = arith.constant 1 : index
    %c0_14 = arith.constant 0 : index
    %c0_15 = arith.constant 0 : index
    %14 = vector.load %arg9[%c1, %c0_14, %c0_15] : memref<4x32x1xf32, #tpu.memory_space<vmem>>, vector<1x32x1xf32>
    %15 = vector.shape_cast %14 : vector<1x32x1xf32> to vector<32x1xf32>
    %16 = vector.broadcast %15 : vector<32x1xf32> to vector<32x64xf32>
    %17 = arith.addf %13, %16 : vector<32x64xf32>
    %cst_16 = arith.constant 0.000000e+00 : f32
    %18 = vector.broadcast %cst_16 : f32 to vector<32x64xf32>
    %19 = arith.maximumf %17, %18 : vector<32x64xf32>
    %c0_17 = arith.constant 0 : index
    %c0_18 = arith.constant 0 : index
    %20 = vector.load %arg7[%c0_17, %c0_18] : memref<32x288xbf16, #tpu.memory_space<vmem>>, vector<32x288xbf16>
    %c0_19 = arith.constant 0 : index
    %c0_20 = arith.constant 0 : index
    %c0_21 = arith.constant 0 : index
    %21 = vector.load %arg3[%c0_19, %c0_20, %c0_21] : memref<1x16x288xbf16, #tpu.memory_space<vmem>>, vector<1x16x288xbf16>
    %22 = vector.shape_cast %21 : vector<1x16x288xbf16> to vector<16x288xbf16>
    %cst_22 = arith.constant dense<0.000000e+00> : vector<32x16xf32>
    %23 = tpu.matmul %20, %22, %cst_22 {dimension_numbers = #tpu.dot_dimension_numbers<[1], [1], [0], [0], [0, 0, 1, 0], [], []>} : vector<32x288xbf16>, vector<16x288xbf16>, vector<32x16xf32> -> vector<32x16xf32>
    %c2 = arith.constant 2 : index
    %c0_23 = arith.constant 0 : index
    %c0_24 = arith.constant 0 : index
    %24 = vector.load %arg9[%c2, %c0_23, %c0_24] : memref<4x32x1xf32, #tpu.memory_space<vmem>>, vector<1x32x1xf32>
    %25 = vector.shape_cast %24 : vector<1x32x1xf32> to vector<32x1xf32>
    %26 = vector.broadcast %25 : vector<32x1xf32> to vector<32x16xf32>
    %27 = arith.addf %23, %26 : vector<32x16xf32>
    %cst_25 = arith.constant 0.000000e+00 : f32
    %28 = vector.broadcast %cst_25 : f32 to vector<32x16xf32>
    %29 = arith.maximumf %27, %28 : vector<32x16xf32>
    %c0_26 = arith.constant 0 : index
    %c0_27 = arith.constant 0 : index
    %30 = vector.load %arg8[%c0_26, %c0_27] : memref<32x576xbf16, #tpu.memory_space<vmem>>, vector<32x576xbf16>
    %c0_28 = arith.constant 0 : index
    %c0_29 = arith.constant 0 : index
    %c0_30 = arith.constant 0 : index
    %31 = vector.load %arg4[%c0_28, %c0_29, %c0_30] : memref<1x4x576xbf16, #tpu.memory_space<vmem>>, vector<1x4x576xbf16>
    %32 = vector.shape_cast %31 : vector<1x4x576xbf16> to vector<4x576xbf16>
    %cst_31 = arith.constant dense<0.000000e+00> : vector<32x4xf32>
    %33 = tpu.matmul %30, %32, %cst_31 {dimension_numbers = #tpu.dot_dimension_numbers<[1], [1], [0], [0], [0, 0, 1, 0], [], []>} : vector<32x576xbf16>, vector<4x576xbf16>, vector<32x4xf32> -> vector<32x4xf32>
    %c3 = arith.constant 3 : index
    %c0_32 = arith.constant 0 : index
    %c0_33 = arith.constant 0 : index
    %34 = vector.load %arg9[%c3, %c0_32, %c0_33] : memref<4x32x1xf32, #tpu.memory_space<vmem>>, vector<1x32x1xf32>
    %35 = vector.shape_cast %34 : vector<1x32x1xf32> to vector<32x1xf32>
    %36 = vector.broadcast %35 : vector<32x1xf32> to vector<32x4xf32>
    %37 = arith.addf %33, %36 : vector<32x4xf32>
    %cst_34 = arith.constant 0.000000e+00 : f32
    %38 = vector.broadcast %cst_34 : f32 to vector<32x4xf32>
    %39 = arith.maximumf %37, %38 : vector<32x4xf32>
    %40 = arith.truncf %19 : vector<32x64xf32> to vector<32x64xbf16>
    %c0_35 = arith.constant 0 : index
    %c0_36 = arith.constant 0 : index
    %41 = vector.load %arg10[%c0_35, %c0_36] : memref<64x256xbf16, #tpu.memory_space<vmem>>, vector<64x256xbf16>
    %cst_37 = arith.constant dense<0.000000e+00> : vector<32x256xf32>
    %42 = tpu.matmul %40, %41, %cst_37 {dimension_numbers = #tpu.dot_dimension_numbers<[1], [0], [0], [1], [0, 0, 1, 1], [], []>} : vector<32x64xbf16>, vector<64x256xbf16>, vector<32x256xf32> -> vector<32x256xf32>
    %43 = arith.truncf %29 : vector<32x16xf32> to vector<32x16xbf16>
    %c0_38 = arith.constant 0 : index
    %c0_39 = arith.constant 0 : index
    %44 = vector.load %arg11[%c0_38, %c0_39] : memref<16x256xbf16, #tpu.memory_space<vmem>>, vector<16x256xbf16>
    %cst_40 = arith.constant dense<0.000000e+00> : vector<32x256xf32>
    %45 = tpu.matmul %43, %44, %cst_40 {dimension_numbers = #tpu.dot_dimension_numbers<[1], [0], [0], [1], [0, 0, 1, 1], [], []>} : vector<32x16xbf16>, vector<16x256xbf16>, vector<32x256xf32> -> vector<32x256xf32>
    %46 = arith.truncf %39 : vector<32x4xf32> to vector<32x4xbf16>
    %c0_41 = arith.constant 0 : index
    %c0_42 = arith.constant 0 : index
    %47 = vector.load %arg12[%c0_41, %c0_42] : memref<4x256xbf16, #tpu.memory_space<vmem>>, vector<4x256xbf16>
    %cst_43 = arith.constant dense<0.000000e+00> : vector<32x256xf32>
    %48 = tpu.matmul %46, %47, %cst_43 {dimension_numbers = #tpu.dot_dimension_numbers<[1], [0], [0], [1], [0, 0, 1, 1], [], []>} : vector<32x4xbf16>, vector<4x256xbf16>, vector<32x256xf32> -> vector<32x256xf32>
    %cst_44 = arith.constant dense<0.000000e+00> : vector<32xf32>
    %49 = vector.multi_reduction <add>, %48, %cst_44 [1] : vector<32x256xf32> to vector<32xf32>
    %50 = vector.shape_cast %49 : vector<32xf32> to vector<32x1xf32>
    %cst_45 = arith.constant 2.560000e+02 : f32
    %51 = vector.broadcast %cst_45 : f32 to vector<32x1xf32>
    %52 = arith.divf %50, %51 : vector<32x1xf32>
    %cst_46 = arith.constant dense<0.000000e+00> : vector<32xf32>
    %53 = vector.multi_reduction <add>, %45, %cst_46 [1] : vector<32x256xf32> to vector<32xf32>
    %54 = vector.shape_cast %53 : vector<32xf32> to vector<32x1xf32>
    %cst_47 = arith.constant 2.560000e+02 : f32
    %55 = vector.broadcast %cst_47 : f32 to vector<32x1xf32>
    %56 = arith.divf %54, %55 : vector<32x1xf32>
    %cst_48 = arith.constant dense<0.000000e+00> : vector<32xf32>
    %57 = vector.multi_reduction <add>, %42, %cst_48 [1] : vector<32x256xf32> to vector<32xf32>
    %58 = vector.shape_cast %57 : vector<32xf32> to vector<32x1xf32>
    %cst_49 = arith.constant 2.560000e+02 : f32
    %59 = vector.broadcast %cst_49 : f32 to vector<32x1xf32>
    %60 = arith.divf %58, %59 : vector<32x1xf32>
    %cst_50 = arith.constant dense<0.000000e+00> : vector<32xf32>
    %61 = vector.multi_reduction <add>, %9, %cst_50 [1] : vector<32x256xf32> to vector<32xf32>
    %62 = vector.shape_cast %61 : vector<32xf32> to vector<32x1xf32>
    %cst_51 = arith.constant 2.560000e+02 : f32
    %63 = vector.broadcast %cst_51 : f32 to vector<32x1xf32>
    %64 = arith.divf %62, %63 : vector<32x1xf32>
    %65 = tpu.concatenate %52, %56, %60, %64 in 0 : vector<32x1xf32>, vector<32x1xf32>, vector<32x1xf32>, vector<32x1xf32> -> vector<128x1xf32>
    %c0_52 = arith.constant 0 : index
    %c0_53 = arith.constant 0 : index
    %66 = vector.load %arg13[%c0_52, %c0_53] : memref<8x128xbf16, #tpu.memory_space<vmem>>, vector<8x128xbf16>
    %67 = arith.truncf %65 : vector<128x1xf32> to vector<128x1xbf16>
    %cst_54 = arith.constant dense<0.000000e+00> : vector<8x1xf32>
    %68 = tpu.matmul %66, %67, %cst_54 {dimension_numbers = #tpu.dot_dimension_numbers<[1], [0], [0], [1], [0, 0, 1, 1], [], []>} : vector<8x128xbf16>, vector<128x1xbf16>, vector<8x1xf32> -> vector<8x1xf32>
    %cst_55 = arith.constant 0.000000e+00 : f32
    %69 = vector.broadcast %cst_55 : f32 to vector<8x1xf32>
    %70 = arith.maximumf %68, %69 : vector<8x1xf32>
    %c0_56 = arith.constant 0 : index
    %c0_57 = arith.constant 0 : index
    %71 = vector.load %arg14[%c0_56, %c0_57] : memref<128x8xbf16, #tpu.memory_space<vmem>>, vector<128x8xbf16>
    %72 = arith.truncf %70 : vector<8x1xf32> to vector<8x1xbf16>
    %cst_58 = arith.constant dense<0.000000e+00> : vector<128x1xf32>
    %73 = tpu.matmul %71, %72, %cst_58 {dimension_numbers = #tpu.dot_dimension_numbers<[1], [0], [0], [1], [0, 0, 1, 1], [], []>} : vector<128x8xbf16>, vector<8x1xbf16>, vector<128x1xf32> -> vector<128x1xf32>
    %74 = arith.negf %73 : vector<128x1xf32>
    %75 = math.exp %74 : vector<128x1xf32>
    %cst_59 = arith.constant 1.000000e+00 : f32
    %76 = vector.broadcast %cst_59 : f32 to vector<128x1xf32>
    %77 = arith.addf %76, %75 : vector<128x1xf32>
    %78 = arith.divf %76, %77 : vector<128x1xf32>
    %cst_60 = arith.constant 0.000000e+00 : f32
    %79 = vector.broadcast %cst_60 : f32 to vector<32x256xf32>
    %80 = vector.extract_strided_slice %78 {offsets = [0, 0], sizes = [32, 1], strides = [1, 1]} : vector<128x1xf32> to vector<32x1xf32>
    %81 = vector.broadcast %80 : vector<32x1xf32> to vector<32x256xf32>
    %82 = arith.mulf %48, %81 : vector<32x256xf32>
    %83 = arith.truncf %82 : vector<32x256xf32> to vector<32x256xbf16>
    %c0_61 = arith.constant 0 : index
    %c0_62 = arith.constant 0 : index
    %c0_63 = arith.constant 0 : index
    %84 = vector.load %arg15[%c0_61, %c0_62, %c0_63] : memref<4x32x32xbf16, #tpu.memory_space<vmem>>, vector<1x32x32xbf16>
    %85 = vector.shape_cast %84 : vector<1x32x32xbf16> to vector<32x32xbf16>
    %cst_64 = arith.constant dense<0.000000e+00> : vector<32x256xf32>
    %86 = tpu.matmul %85, %83, %cst_64 {dimension_numbers = #tpu.dot_dimension_numbers<[1], [0], [0], [1], [0, 0, 1, 1], [], []>} : vector<32x32xbf16>, vector<32x256xbf16>, vector<32x256xf32> -> vector<32x256xf32>
    %87 = arith.addf %79, %86 : vector<32x256xf32>
    %88 = vector.extract_strided_slice %78 {offsets = [32, 0], sizes = [32, 1], strides = [1, 1]} : vector<128x1xf32> to vector<32x1xf32>
    %89 = vector.broadcast %88 : vector<32x1xf32> to vector<32x256xf32>
    %90 = arith.mulf %45, %89 : vector<32x256xf32>
    %91 = arith.truncf %90 : vector<32x256xf32> to vector<32x256xbf16>
    %c1_65 = arith.constant 1 : index
    %c0_66 = arith.constant 0 : index
    %c0_67 = arith.constant 0 : index
    %92 = vector.load %arg15[%c1_65, %c0_66, %c0_67] : memref<4x32x32xbf16, #tpu.memory_space<vmem>>, vector<1x32x32xbf16>
    %93 = vector.shape_cast %92 : vector<1x32x32xbf16> to vector<32x32xbf16>
    %cst_68 = arith.constant dense<0.000000e+00> : vector<32x256xf32>
    %94 = tpu.matmul %93, %91, %cst_68 {dimension_numbers = #tpu.dot_dimension_numbers<[1], [0], [0], [1], [0, 0, 1, 1], [], []>} : vector<32x32xbf16>, vector<32x256xbf16>, vector<32x256xf32> -> vector<32x256xf32>
    %95 = arith.addf %87, %94 : vector<32x256xf32>
    %96 = vector.extract_strided_slice %78 {offsets = [64, 0], sizes = [32, 1], strides = [1, 1]} : vector<128x1xf32> to vector<32x1xf32>
    %97 = vector.broadcast %96 : vector<32x1xf32> to vector<32x256xf32>
    %98 = arith.mulf %42, %97 : vector<32x256xf32>
    %99 = arith.truncf %98 : vector<32x256xf32> to vector<32x256xbf16>
    %c2_69 = arith.constant 2 : index
    %c0_70 = arith.constant 0 : index
    %c0_71 = arith.constant 0 : index
    %100 = vector.load %arg15[%c2_69, %c0_70, %c0_71] : memref<4x32x32xbf16, #tpu.memory_space<vmem>>, vector<1x32x32xbf16>
    %101 = vector.shape_cast %100 : vector<1x32x32xbf16> to vector<32x32xbf16>
    %cst_72 = arith.constant dense<0.000000e+00> : vector<32x256xf32>
    %102 = tpu.matmul %101, %99, %cst_72 {dimension_numbers = #tpu.dot_dimension_numbers<[1], [0], [0], [1], [0, 0, 1, 1], [], []>} : vector<32x32xbf16>, vector<32x256xbf16>, vector<32x256xf32> -> vector<32x256xf32>
    %103 = arith.addf %95, %102 : vector<32x256xf32>
    %104 = vector.extract_strided_slice %78 {offsets = [96, 0], sizes = [32, 1], strides = [1, 1]} : vector<128x1xf32> to vector<32x1xf32>
    %105 = vector.broadcast %104 : vector<32x1xf32> to vector<32x256xf32>
    %106 = arith.mulf %9, %105 : vector<32x256xf32>
    %107 = arith.truncf %106 : vector<32x256xf32> to vector<32x256xbf16>
    %c3_73 = arith.constant 3 : index
    %c0_74 = arith.constant 0 : index
    %c0_75 = arith.constant 0 : index
    %108 = vector.load %arg15[%c3_73, %c0_74, %c0_75] : memref<4x32x32xbf16, #tpu.memory_space<vmem>>, vector<1x32x32xbf16>
    %109 = vector.shape_cast %108 : vector<1x32x32xbf16> to vector<32x32xbf16>
    %cst_76 = arith.constant dense<0.000000e+00> : vector<32x256xf32>
    %110 = tpu.matmul %109, %107, %cst_76 {dimension_numbers = #tpu.dot_dimension_numbers<[1], [0], [0], [1], [0, 0, 1, 1], [], []>} : vector<32x32xbf16>, vector<32x256xbf16>, vector<32x256xf32> -> vector<32x256xf32>
    %111 = arith.addf %103, %110 : vector<32x256xf32>
    %c0_77 = arith.constant 0 : index
    %c0_78 = arith.constant 0 : index
    %112 = vector.load %arg16[%c0_77, %c0_78] : memref<32x1xf32, #tpu.memory_space<vmem>>, vector<32x1xf32>
    %113 = vector.broadcast %112 : vector<32x1xf32> to vector<32x256xf32>
    %114 = arith.addf %111, %113 : vector<32x256xf32>
    %c0_79 = arith.constant 0 : index
    %c0_80 = arith.constant 0 : index
    %c0_81 = arith.constant 0 : index
    %115 = vector.load %arg17[%c0_79, %c0_80, %c0_81] : memref<1x32x256xf32, #tpu.memory_space<vmem>>, vector<1x32x256xf32>
    %116 = vector.shape_cast %115 : vector<1x32x256xf32> to vector<32x256xf32>
    %117 = vector.shape_cast %114 : vector<32x256xf32> to vector<1x32x256xf32>
    tpu.vector_store %arg17[%c0_79, %c0_80, %c0_81], %117 {strides = array<i32>} : memref<1x32x256xf32, #tpu.memory_space<vmem>>, vector<1x32x256xf32>,
    return
  }
  func.func @transform_0(%arg0: i32) -> (i32, i32, i32) {
    %c0_i32 = arith.constant 0 : i32
    %c0_i32_0 = arith.constant 0 : i32
    %c0_i32_1 = arith.constant 0 : i32
    return %arg0, %c0_i32, %c0_i32_0 : i32, i32, i32
  }
  func.func @transform_1(%arg0: i32) -> (i32, i32, i32) {
    %c0_i32 = arith.constant 0 : i32
    %c0_i32_0 = arith.constant 0 : i32
    %c0_i32_1 = arith.constant 0 : i32
    return %arg0, %c0_i32, %c0_i32_0 : i32, i32, i32
  }
  func.func @transform_2(%arg0: i32) -> (i32, i32, i32) {
    %c0_i32 = arith.constant 0 : i32
    %c0_i32_0 = arith.constant 0 : i32
    %c0_i32_1 = arith.constant 0 : i32
    return %arg0, %c0_i32, %c0_i32_0 : i32, i32, i32
  }
  func.func @transform_3(%arg0: i32) -> (i32, i32, i32) {
    %c0_i32 = arith.constant 0 : i32
    %c0_i32_0 = arith.constant 0 : i32
    %c0_i32_1 = arith.constant 0 : i32
    return %arg0, %c0_i32, %c0_i32_0 : i32, i32, i32
  }
  func.func @transform_4(%arg0: i32) -> (i32, i32) {
    %c0_i32 = arith.constant 0 : i32
    %c0_i32_0 = arith.constant 0 : i32
    %c0_i32_1 = arith.constant 0 : i32
    return %c0_i32, %c0_i32_0 : i32, i32
  }
  func.func @transform_5(%arg0: i32) -> (i32, i32) {
    %c0_i32 = arith.constant 0 : i32
    %c0_i32_0 = arith.constant 0 : i32
    %c0_i32_1 = arith.constant 0 : i32
    return %c0_i32, %c0_i32_0 : i32, i32
  }
  func.func @transform_6(%arg0: i32) -> (i32, i32) {
    %c0_i32 = arith.constant 0 : i32
    %c0_i32_0 = arith.constant 0 : i32
    %c0_i32_1 = arith.constant 0 : i32
    return %c0_i32, %c0_i32_0 : i32, i32
  }
  func.func @transform_7(%arg0: i32) -> (i32, i32) {
    %c0_i32 = arith.constant 0 : i32
    %c0_i32_0 = arith.constant 0 : i32
    %c0_i32_1 = arith.constant 0 : i32
    return %c0_i32, %c0_i32_0 : i32, i32
  }
  func.func @transform_8(%arg0: i32) -> (i32, i32, i32) {
    %c0_i32 = arith.constant 0 : i32
    %c0_i32_0 = arith.constant 0 : i32
    %c0_i32_1 = arith.constant 0 : i32
    %c0_i32_2 = arith.constant 0 : i32
    return %c0_i32, %c0_i32_0, %c0_i32_1 : i32, i32, i32
  }
  func.func @transform_9(%arg0: i32) -> (i32, i32) {
    %c0_i32 = arith.constant 0 : i32
    %c0_i32_0 = arith.constant 0 : i32
    %c0_i32_1 = arith.constant 0 : i32
    return %c0_i32, %c0_i32_0 : i32, i32
  }
  func.func @transform_10(%arg0: i32) -> (i32, i32) {
    %c0_i32 = arith.constant 0 : i32
    %c0_i32_0 = arith.constant 0 : i32
    %c0_i32_1 = arith.constant 0 : i32
    return %c0_i32, %c0_i32_0 : i32, i32
  }
  func.func @transform_11(%arg0: i32) -> (i32, i32) {
    %c0_i32 = arith.constant 0 : i32
    %c0_i32_0 = arith.constant 0 : i32
    %c0_i32_1 = arith.constant 0 : i32
    return %c0_i32, %c0_i32_0 : i32, i32
  }
  func.func @transform_12(%arg0: i32) -> (i32, i32) {
    %c0_i32 = arith.constant 0 : i32
    %c0_i32_0 = arith.constant 0 : i32
    %c0_i32_1 = arith.constant 0 : i32
    return %c0_i32, %c0_i32_0 : i32, i32
  }
  func.func @transform_13(%arg0: i32) -> (i32, i32) {
    %c0_i32 = arith.constant 0 : i32
    %c0_i32_0 = arith.constant 0 : i32
    %c0_i32_1 = arith.constant 0 : i32
    return %c0_i32, %c0_i32_0 : i32, i32
  }
  func.func @transform_14(%arg0: i32) -> (i32, i32, i32) {
    %c0_i32 = arith.constant 0 : i32
    %c0_i32_0 = arith.constant 0 : i32
    %c0_i32_1 = arith.constant 0 : i32
    %c0_i32_2 = arith.constant 0 : i32
    return %c0_i32, %c0_i32_0, %c0_i32_1 : i32, i32, i32
  }
  func.func @transform_15(%arg0: i32) -> (i32, i32) {
    %c0_i32 = arith.constant 0 : i32
    %c0_i32_0 = arith.constant 0 : i32
    %c0_i32_1 = arith.constant 0 : i32
    return %c0_i32, %c0_i32_0 : i32, i32
  }
  func.func @transform_16(%arg0: i32) -> (i32, i32, i32) {
    %c0_i32 = arith.constant 0 : i32
    %c0_i32_0 = arith.constant 0 : i32
    %c0_i32_1 = arith.constant 0 : i32
    return %arg0, %c0_i32, %c0_i32_0 : i32, i32, i32
  }
}

</mosaic_0001>

<llo_original>
// kernel: gpg2_forward.1
$region0: #{gpg2_forward.1}
  #allocation0 [shape = 'u32[]', space=smem, size = 0x4, offset = 0x4, fixed_abs, tag = 'smem constant byte address 0x4 - core index']
  #allocation1 [shape = 'u32[144,128]{1,0:T(1,128)}', space=vmem, size = 0x12000, scoped, tag = 'internal scratch']
  %s0 = inlined_call_operand.vmem [shape: bf16[2,72,256], index: 0, kind: input, shape index: {}]
  %s1 = inlined_call_operand.vmem [shape: bf16[2,64,144], index: 1, kind: input, shape index: {}]
  %s2 = inlined_call_operand.vmem [shape: bf16[2,16,288], index: 2, kind: input, shape index: {}]
  %s3 = inlined_call_operand.vmem [shape: bf16[2,4,576], index: 3, kind: input, shape index: {}]
  %s4 = inlined_call_operand.vmem [shape: bf16[32,72], index: 4, kind: input, shape index: {}]
  %s5 = inlined_call_operand.vmem [shape: bf16[32,144], index: 5, kind: input, shape index: {}]
  %s6 = inlined_call_operand.vmem [shape: bf16[32,288], index: 6, kind: input, shape index: {}]
  %s7 = inlined_call_operand.vmem [shape: bf16[32,576], index: 7, kind: input, shape index: {}]
  %s8 = inlined_call_operand.vmem [shape: f32[4,32,1], index: 8, kind: input, shape index: {}]
  %s9 = inlined_call_operand.vmem [shape: bf16[64,256], index: 9, kind: input, shape index: {}]
  %s10 = inlined_call_operand.vmem [shape: bf16[16,256], index: 10, kind: input, shape index: {}]
  %s11 = inlined_call_operand.vmem [shape: bf16[4,256], index: 11, kind: input, shape index: {}]
  %s12 = inlined_call_operand.vmem [shape: bf16[8,128], index: 12, kind: input, shape index: {}]
  %s13 = inlined_call_operand.vmem [shape: bf16[128,8], index: 13, kind: input, shape index: {}]
  %s14 = inlined_call_operand.vmem [shape: bf16[4,32,32], index: 14, kind: input, shape index: {}]
  %s15 = inlined_call_operand.vmem [shape: f32[32,1], index: 15, kind: input, shape index: {}]
  %s16 = inlined_call_operand.vmem [shape: f32[2,32,256], index: 16, kind: output, shape index: {}]
  %s17 = sld [smem:[#allocation0]]
  $region97: #{gpg2_forward.1} parent=0
    _
  %s19 = ssub.s32 1, %s17
  %s20 = scalar_select 0, %s19, %s17
  loop: start=0, step=1, limit=4
  $region2: #{gpg2_forward.1} parent=0 // loop_pre_header
    _
  $region3: #{gpg2_forward.1} parent=0 // loop_header
    %s22 = sphi 0, %s26
    %p23 = scmp.ge.s32.totalorder %s22, 4
    %s32 = sphi 0, %s34
    %s35 = sphi 0, %s32
    %s36 = sphi 0, %s35
    %s52 = sphi 0, %s36
    %s58 = sphi 0, %s60
    %s61 = sphi 0, %s58
    %s62 = sphi 0, %s61
    %s78 = sphi 0, %s62
    %s84 = sphi 0, %s86
    %s87 = sphi 0, %s84
    %s88 = sphi 0, %s87
    %s104 = sphi 0, %s88
    %s110 = sphi 0, %s112
    %s113 = sphi 0, %s110
    %s114 = sphi 0, %s113
    %s130 = sphi 0, %s114
    %s134 = sphi 0, %s134
    %s136 = sphi 0, %s134
    %s137 = sphi 0, %s136
    %s151 = sphi 0, %s137
    %s155 = sphi 0, %s155
    %s157 = sphi 0, %s155
    %s158 = sphi 0, %s157
    %s172 = sphi 0, %s158
    %s176 = sphi 0, %s176
    %s178 = sphi 0, %s176
    %s179 = sphi 0, %s178
    %s193 = sphi 0, %s179
    %s197 = sphi 0, %s197
    %s199 = sphi 0, %s197
    %s200 = sphi 0, %s199
    %s214 = sphi 0, %s200
    %s218 = sphi 0, %s218
    %s220 = sphi 0, %s218
    %s221 = sphi 0, %s220
    %s235 = sphi 0, %s221
    %s239 = sphi 0, %s239
    %s241 = sphi 0, %s239
    %s242 = sphi 0, %s241
    %s256 = sphi 0, %s242
    %s260 = sphi 0, %s260
    %s262 = sphi 0, %s260
    %s263 = sphi 0, %s262
    %s277 = sphi 0, %s263
    %s281 = sphi 0, %s281
    %s283 = sphi 0, %s281
    %s284 = sphi 0, %s283
    %s298 = sphi 0, %s284
    %s302 = sphi 0, %s302
    %s304 = sphi 0, %s302
    %s305 = sphi 0, %s304
    %s319 = sphi 0, %s305
    %s323 = sphi 0, %s323
    %s325 = sphi 0, %s323
    %s326 = sphi 0, %s325
    %s340 = sphi 0, %s326
    %s344 = sphi 0, %s344
    %s346 = sphi 0, %s344
    %s347 = sphi 0, %s346
    %s361 = sphi 0, %s347
    %s365 = sphi 0, %s365
    %s367 = sphi 0, %s365
    %s368 = sphi 0, %s367
    %s382 = sphi 0, %s368
    %s388 = sphi 0, %s390
    %s391 = sphi 0, %s388
    %s392 = sphi 0, %s391
    %s408 = sphi 0, %s392
  $region4: #{gpg2_forward.1} parent=0 // loop_header_branch
    %25 = sbr.rel (%p23) target = $region8
  $region5: #{gpg2_forward.1} parent=0 // loop_body
    %s27 = ssub.s32 %s22, 1
    %s28 = ssub.s32 %s22, 2
    %s29 = sadd.s32 %s22, 1
    %s30 = ssub.s32 %s22, %s29
    %p31 = scmp.eq.s32.totalorder %s30, 0
    %s33 = sadd.s32 %s32, 1
    %s34 = scalar_select %p31, %s32, %s33
    %p37 = pneg %p31
    %p38 = scmp.eq.s32.totalorder %s22, 1
    %p39 = por %p37, %p38
    %p40 = scmp.ne.s32.totalorder %s32, %s35
    %p41 = scmp.eq.s32.totalorder %s22, 0
    %p42 = por %p40, %p41
    %p43 = scmp.ne.s32.totalorder %s32, %s35
    %p44 = scmp.eq.s32.totalorder %s27, 1
    %p45 = por %p43, %p44
    %p46 = scmp.ne.s32.totalorder %s35, %s36
    %p47 = scmp.eq.s32.totalorder %s27, 0
    %p48 = por %p46, %p47
    %p49 = scmp.ne.s32.totalorder %s35, %s36
    %p50 = scmp.eq.s32.totalorder %s28, 1
    %p51 = por %p49, %p50
    %p53 = scmp.ne.s32.totalorder %s36, %s52
    %p54 = scmp.eq.s32.totalorder %s28, 0
    %p55 = por %p53, %p54
    %s56 = ssub.s32 %s22, %s29
    %p57 = scmp.eq.s32.totalorder %s56, 0
    %s59 = sadd.s32 %s58, 1
    %s60 = scalar_select %p57, %s58, %s59
    %p63 = pneg %p57
    %p64 = scmp.eq.s32.totalorder %s22, 1
    %p65 = por %p63, %p64
    %p66 = scmp.ne.s32.totalorder %s58, %s61
    %p67 = scmp.eq.s32.totalorder %s22, 0
    %p68 = por %p66, %p67
    %p69 = scmp.ne.s32.totalorder %s58, %s61
    %p70 = scmp.eq.s32.totalorder %s27, 1
    %p71 = por %p69, %p70
    %p72 = scmp.ne.s32.totalorder %s61, %s62
    %p73 = scmp.eq.s32.totalorder %s27, 0
    %p74 = por %p72, %p73
    %p75 = scmp.ne.s32.totalorder %s61, %s62
    %p76 = scmp.eq.s32.totalorder %s28, 1
    %p77 = por %p75, %p76
    %p79 = scmp.ne.s32.totalorder %s62, %s78
    %p80 = scmp.eq.s32.totalorder %s28, 0
    %p81 = por %p79, %p80
    %s82 = ssub.s32 %s22, %s29
    %p83 = scmp.eq.s32.totalorder %s82, 0
    %s85 = sadd.s32 %s84, 1
    %s86 = scalar_select %p83, %s84, %s85
    %p89 = pneg %p83
    %p90 = scmp.eq.s32.totalorder %s22, 1
    %p91 = por %p89, %p90
    %p92 = scmp.ne.s32.totalorder %s84, %s87
    %p93 = scmp.eq.s32.totalorder %s22, 0
    %p94 = por %p92, %p93
    %p95 = scmp.ne.s32.totalorder %s84, %s87
    %p96 = scmp.eq.s32.totalorder %s27, 1
    %p97 = por %p95, %p96
    %p98 = scmp.ne.s32.totalorder %s87, %s88
    %p99 = scmp.eq.s32.totalorder %s27, 0
    %p100 = por %p98, %p99
    %p101 = scmp.ne.s32.totalorder %s87, %s88
    %p102 = scmp.eq.s32.totalorder %s28, 1
    %p103 = por %p101, %p102
    %p105 = scmp.ne.s32.totalorder %s88, %s104
    %p106 = scmp.eq.s32.totalorder %s28, 0
    %p107 = por %p105, %p106
    %s108 = ssub.s32 %s22, %s29
    %p109 = scmp.eq.s32.totalorder %s108, 0
    %s111 = sadd.s32 %s110, 1
    %s112 = scalar_select %p109, %s110, %s111
    %p115 = pneg %p109
    %p116 = scmp.eq.s32.totalorder %s22, 1
    %p117 = por %p115, %p116
    %p118 = scmp.ne.s32.totalorder %s110, %s113
    %p119 = scmp.eq.s32.totalorder %s22, 0
    %p120 = por %p118, %p119
    %p121 = scmp.ne.s32.totalorder %s110, %s113
    %p122 = scmp.eq.s32.totalorder %s27, 1
    %p123 = por %p121, %p122
    %p124 = scmp.ne.s32.totalorder %s113, %s114
    %p125 = scmp.eq.s32.totalorder %s27, 0
    %p126 = por %p124, %p125
    %p127 = scmp.ne.s32.totalorder %s113, %s114
    %p128 = scmp.eq.s32.totalorder %s28, 1
    %p129 = por %p127, %p128
    %p131 = scmp.ne.s32.totalorder %s114, %s130
    %p132 = scmp.eq.s32.totalorder %s28, 0
    %p133 = por %p131, %p132
    %s135 = sadd.s32 %s134, 1
    %p138 = scmp.eq.s32.totalorder %s22, 1
    %p139 = scmp.ne.s32.totalorder %s134, %s136
    %p140 = scmp.eq.s32.totalorder %s22, 0
    %p141 = por %p139, %p140
    %p142 = scmp.ne.s32.totalorder %s134, %s136
    %p143 = scmp.eq.s32.totalorder %s27, 1
    %p144 = por %p142, %p143
    %p145 = scmp.ne.s32.totalorder %s136, %s137
    %p146 = scmp.eq.s32.totalorder %s27, 0
    %p147 = por %p145, %p146
    %p148 = scmp.ne.s32.totalorder %s136, %s137
    %p149 = scmp.eq.s32.totalorder %s28, 1
    %p150 = por %p148, %p149
    %p152 = scmp.ne.s32.totalorder %s137, %s151
    %p153 = scmp.eq.s32.totalorder %s28, 0
    %p154 = por %p152, %p153
    %s156 = sadd.s32 %s155, 1
    %p159 = scmp.eq.s32.totalorder %s22, 1
    %p160 = scmp.ne.s32.totalorder %s155, %s157
    %p161 = scmp.eq.s32.totalorder %s22, 0
    %p162 = por %p160, %p161
    %p163 = scmp.ne.s32.totalorder %s155, %s157
    %p164 = scmp.eq.s32.totalorder %s27, 1
    %p165 = por %p163, %p164
    %p166 = scmp.ne.s32.totalorder %s157, %s158
    %p167 = scmp.eq.s32.totalorder %s27, 0
    %p168 = por %p166, %p167
    %p169 = scmp.ne.s32.totalorder %s157, %s158
    %p170 = scmp.eq.s32.totalorder %s28, 1
    %p171 = por %p169, %p170
    %p173 = scmp.ne.s32.totalorder %s158, %s172
    %p174 = scmp.eq.s32.totalorder %s28, 0
    %p175 = por %p173, %p174
    %s177 = sadd.s32 %s176, 1
    %p180 = scmp.eq.s32.totalorder %s22, 1
    %p181 = scmp.ne.s32.totalorder %s176, %s178
    %p182 = scmp.eq.s32.totalorder %s22, 0
    %p183 = por %p181, %p182
    %p184 = scmp.ne.s32.totalorder %s176, %s178
    %p185 = scmp.eq.s32.totalorder %s27, 1
    %p186 = por %p184, %p185
    %p187 = scmp.ne.s32.totalorder %s178, %s179
    %p188 = scmp.eq.s32.totalorder %s27, 0
    %p189 = por %p187, %p188
    %p190 = scmp.ne.s32.totalorder %s178, %s179
    %p191 = scmp.eq.s32.totalorder %s28, 1
    %p192 = por %p190, %p191
    %p194 = scmp.ne.s32.totalorder %s179, %s193
    %p195 = scmp.eq.s32.totalorder %s28, 0
    %p196 = por %p194, %p195
    %s198 = sadd.s32 %s197, 1
    %p201 = scmp.eq.s32.totalorder %s22, 1
    %p202 = scmp.ne.s32.totalorder %s197, %s199
    %p203 = scmp.eq.s32.totalorder %s22, 0
    %p204 = por %p202, %p203
    %p205 = scmp.ne.s32.totalorder %s197, %s199
    %p206 = scmp.eq.s32.totalorder %s27, 1
    %p207 = por %p205, %p206
    %p208 = scmp.ne.s32.totalorder %s199, %s200
    %p209 = scmp.eq.s32.totalorder %s27, 0
    %p210 = por %p208, %p209
    %p211 = scmp.ne.s32.totalorder %s199, %s200
    %p212 = scmp.eq.s32.totalorder %s28, 1
    %p213 = por %p211, %p212
    %p215 = scmp.ne.s32.totalorder %s200, %s214
    %p216 = scmp.eq.s32.totalorder %s28, 0
    %p217 = por %p215, %p216
    %s219 = sadd.s32 %s218, 1
    %p222 = scmp.eq.s32.totalorder %s22, 1
    %p223 = scmp.ne.s32.totalorder %s218, %s220
    %p224 = scmp.eq.s32.totalorder %s22, 0
    %p225 = por %p223, %p224
    %p226 = scmp.ne.s32.totalorder %s218, %s220
    %p227 = scmp.eq.s32.totalorder %s27, 1
    %p228 = por %p226, %p227
    %p229 = scmp.ne.s32.totalorder %s220, %s221
    %p230 = scmp.eq.s32.totalorder %s27, 0
    %p231 = por %p229, %p230
    %p232 = scmp.ne.s32.totalorder %s220, %s221
    %p233 = scmp.eq.s32.totalorder %s28, 1
    %p234 = por %p232, %p233
    %p236 = scmp.ne.s32.totalorder %s221, %s235
    %p237 = scmp.eq.s32.totalorder %s28, 0
    %p238 = por %p236, %p237
    %s240 = sadd.s32 %s239, 1
    %p243 = scmp.eq.s32.totalorder %s22, 1
    %p244 = scmp.ne.s32.totalorder %s239, %s241
    %p245 = scmp.eq.s32.totalorder %s22, 0
    %p246 = por %p244, %p245
    %p247 = scmp.ne.s32.totalorder %s239, %s241
    %p248 = scmp.eq.s32.totalorder %s27, 1
    %p249 = por %p247, %p248
    %p250 = scmp.ne.s32.totalorder %s241, %s242
    %p251 = scmp.eq.s32.totalorder %s27, 0
    %p252 = por %p250, %p251
    %p253 = scmp.ne.s32.totalorder %s241, %s242
    %p254 = scmp.eq.s32.totalorder %s28, 1
    %p255 = por %p253, %p254
    %p257 = scmp.ne.s32.totalorder %s242, %s256
    %p258 = scmp.eq.s32.totalorder %s28, 0
    %p259 = por %p257, %p258
    %s261 = sadd.s32 %s260, 1
    %p264 = scmp.eq.s32.totalorder %s22, 1
    %p265 = scmp.ne.s32.totalorder %s260, %s262
    %p266 = scmp.eq.s32.totalorder %s22, 0
    %p267 = por %p265, %p266
    %p268 = scmp.ne.s32.totalorder %s260, %s262
    %p269 = scmp.eq.s32.totalorder %s27, 1
    %p270 = por %p268, %p269
    %p271 = scmp.ne.s32.totalorder %s262, %s263
    %p272 = scmp.eq.s32.totalorder %s27, 0
    %p273 = por %p271, %p272
    %p274 = scmp.ne.s32.totalorder %s262, %s263
    %p275 = scmp.eq.s32.totalorder %s28, 1
    %p276 = por %p274, %p275
    %p278 = scmp.ne.s32.totalorder %s263, %s277
    %p279 = scmp.eq.s32.totalorder %s28, 0
    %p280 = por %p278, %p279
    %s282 = sadd.s32 %s281, 1
    %p285 = scmp.eq.s32.totalorder %s22, 1
    %p286 = scmp.ne.s32.totalorder %s281, %s283
    %p287 = scmp.eq.s32.totalorder %s22, 0
    %p288 = por %p286, %p287
    %p289 = scmp.ne.s32.totalorder %s281, %s283
    %p290 = scmp.eq.s32.totalorder %s27, 1
    %p291 = por %p289, %p290
    %p292 = scmp.ne.s32.totalorder %s283, %s284
    %p293 = scmp.eq.s32.totalorder %s27, 0
    %p294 = por %p292, %p293
    %p295 = scmp.ne.s32.totalorder %s283, %s284
    %p296 = scmp.eq.s32.totalorder %s28, 1
    %p297 = por %p295, %p296
    %p299 = scmp.ne.s32.totalorder %s284, %s298
    %p300 = scmp.eq.s32.totalorder %s28, 0
    %p301 = por %p299, %p300
    %s303 = sadd.s32 %s302, 1
    %p306 = scmp.eq.s32.totalorder %s22, 1
    %p307 = scmp.ne.s32.totalorder %s302, %s304
    %p308 = scmp.eq.s32.totalorder %s22, 0
    %p309 = por %p307, %p308
    %p310 = scmp.ne.s32.totalorder %s302, %s304
    %p311 = scmp.eq.s32.totalorder %s27, 1
    %p312 = por %p310, %p311
    %p313 = scmp.ne.s32.totalorder %s304, %s305
    %p314 = scmp.eq.s32.totalorder %s27, 0
    %p315 = por %p313, %p314
    %p316 = scmp.ne.s32.totalorder %s304, %s305
    %p317 = scmp.eq.s32.totalorder %s28, 1
    %p318 = por %p316, %p317
    %p320 = scmp.ne.s32.totalorder %s305, %s319
    %p321 = scmp.eq.s32.totalorder %s28, 0
    %p322 = por %p320, %p321
    %s324 = sadd.s32 %s323, 1
    %p327 = scmp.eq.s32.totalorder %s22, 1
    %p328 = scmp.ne.s32.totalorder %s323, %s325
    %p329 = scmp.eq.s32.totalorder %s22, 0
    %p330 = por %p328, %p329
    %p331 = scmp.ne.s32.totalorder %s323, %s325
    %p332 = scmp.eq.s32.totalorder %s27, 1
    %p333 = por %p331, %p332
    %p334 = scmp.ne.s32.totalorder %s325, %s326
    %p335 = scmp.eq.s32.totalorder %s27, 0
    %p336 = por %p334, %p335
    %p337 = scmp.ne.s32.totalorder %s325, %s326
    %p338 = scmp.eq.s32.totalorder %s28, 1
    %p339 = por %p337, %p338
    %p341 = scmp.ne.s32.totalorder %s326, %s340
    %p342 = scmp.eq.s32.totalorder %s28, 0
    %p343 = por %p341, %p342
    %s345 = sadd.s32 %s344, 1
    %p348 = scmp.eq.s32.totalorder %s22, 1
    %p349 = scmp.ne.s32.totalorder %s344, %s346
    %p350 = scmp.eq.s32.totalorder %s22, 0
    %p351 = por %p349, %p350
    %p352 = scmp.ne.s32.totalorder %s344, %s346
    %p353 = scmp.eq.s32.totalorder %s27, 1
    %p354 = por %p352, %p353
    %p355 = scmp.ne.s32.totalorder %s346, %s347
    %p356 = scmp.eq.s32.totalorder %s27, 0
    %p357 = por %p355, %p356
    %p358 = scmp.ne.s32.totalorder %s346, %s347
    %p359 = scmp.eq.s32.totalorder %s28, 1
    %p360 = por %p358, %p359
    %p362 = scmp.ne.s32.totalorder %s347, %s361
    %p363 = scmp.eq.s32.totalorder %s28, 0
    %p364 = por %p362, %p363
    %s366 = sadd.s32 %s365, 1
    %p369 = scmp.eq.s32.totalorder %s22, 1
    %p370 = scmp.ne.s32.totalorder %s365, %s367
    %p371 = scmp.eq.s32.totalorder %s22, 0
    %p372 = por %p370, %p371
    %p373 = scmp.ne.s32.totalorder %s365, %s367
    %p374 = scmp.eq.s32.totalorder %s27, 1
    %p375 = por %p373, %p374
    %p376 = scmp.ne.s32.totalorder %s367, %s368
    %p377 = scmp.eq.s32.totalorder %s27, 0
    %p378 = por %p376, %p377
    %p379 = scmp.ne.s32.totalorder %s367, %s368
    %p380 = scmp.eq.s32.totalorder %s28, 1
    %p381 = por %p379, %p380
    %p383 = scmp.ne.s32.totalorder %s368, %s382
    %p384 = scmp.eq.s32.totalorder %s28, 0
    %p385 = por %p383, %p384
    %s386 = ssub.s32 %s22, %s29
    %p387 = scmp.eq.s32.totalorder %s386, 0
    %s389 = sadd.s32 %s388, 1
    %s390 = scalar_select %p387, %s388, %s389
    %p393 = pneg %p387
    %p394 = scmp.eq.s32.totalorder %s22, 1
    %p395 = por %p393, %p394
    %p396 = scmp.ne.s32.totalorder %s388, %s391
    %p397 = scmp.eq.s32.totalorder %s22, 0
    %p398 = por %p396, %p397
    %p399 = scmp.ne.s32.totalorder %s388, %s391
    %p400 = scmp.eq.s32.totalorder %s27, 1
    %p401 = por %p399, %p400
    %p402 = scmp.ne.s32.totalorder %s391, %s392
    %p403 = scmp.eq.s32.totalorder %s27, 0
    %p404 = por %p402, %p403
    %p405 = scmp.ne.s32.totalorder %s391, %s392
    %p406 = scmp.eq.s32.totalorder %s28, 1
    %p407 = por %p405, %p406
    %p409 = scmp.ne.s32.totalorder %s392, %s408
    %p410 = scmp.eq.s32.totalorder %s28, 0
    %p411 = por %p409, %p410
    %p412 = scmp.le.s32.totalorder 1, %s22
    %p413 = scmp.lt.s32.totalorder %s22, 3
    %p414 = pnand %p412, %p413
    %p415 = pneg %p414
    // Predicated region
    $region9: #{gpg2_forward.1} parent=5 // pred_check
      _
    $region10: #{gpg2_forward.1} parent=5 // pred_check_branch
      %417 = sbr.rel (%p414) target = $region12
    $region11: #{gpg2_forward.1} parent=5 // pred_region
      %s418 = ssub.s32 %s22, 1
      // Predicated region
      $region13: #{gpg2_forward.1} parent=11 // pred_check
        %p419 = pneg %p147
      $region14: #{gpg2_forward.1} parent=11 // pred_check_branch
        %421 = sbr.rel (%p419) target = $region16
      $region15: #{gpg2_forward.1} parent=11 // pred_region
        _
      $region16: #{gpg2_forward.1} parent=11 // pred_fallthru
        _
      // Predicated region
      $region17: #{gpg2_forward.1} parent=11 // pred_check
        %p422 = pneg %p168
      $region18: #{gpg2_forward.1} parent=11 // pred_check_branch
        %424 = sbr.rel (%p422) target = $region20
      $region19: #{gpg2_forward.1} parent=11 // pred_region
        _
      $region20: #{gpg2_forward.1} parent=11 // pred_fallthru
        _
      // Predicated region
      $region21: #{gpg2_forward.1} parent=11 // pred_check
        %p425 = pneg %p189
      $region22: #{gpg2_forward.1} parent=11 // pred_check_branch
        %427 = sbr.rel (%p425) target = $region24
      $region23: #{gpg2_forward.1} parent=11 // pred_region
        _
      $region24: #{gpg2_forward.1} parent=11 // pred_fallthru
        _
      // Predicated region
      $region25: #{gpg2_forward.1} parent=11 // pred_check
        %p428 = pneg %p210
      $region26: #{gpg2_forward.1} parent=11 // pred_check_branch
        %430 = sbr.rel (%p428) target = $region28
      $region27: #{gpg2_forward.1} parent=11 // pred_region
        _
      $region28: #{gpg2_forward.1} parent=11 // pred_fallthru
        _
      // Predicated region
      $region29: #{gpg2_forward.1} parent=11 // pred_check
        %p431 = pneg %p231
      $region30: #{gpg2_forward.1} parent=11 // pred_check_branch
        %433 = sbr.rel (%p431) target = $region32
      $region31: #{gpg2_forward.1} parent=11 // pred_region
        _
      $region32: #{gpg2_forward.1} parent=11 // pred_fallthru
        _
      // Predicated region
      $region33: #{gpg2_forward.1} parent=11 // pred_check
        %p434 = pneg %p252
      $region34: #{gpg2_forward.1} parent=11 // pred_check_branch
        %436 = sbr.rel (%p434) target = $region36
      $region35: #{gpg2_forward.1} parent=11 // pred_region
        _
      $region36: #{gpg2_forward.1} parent=11 // pred_fallthru
        _
      // Predicated region
      $region37: #{gpg2_forward.1} parent=11 // pred_check
        %p437 = pneg %p273
      $region38: #{gpg2_forward.1} parent=11 // pred_check_branch
        %439 = sbr.rel (%p437) target = $region40
      $region39: #{gpg2_forward.1} parent=11 // pred_region
        _
      $region40: #{gpg2_forward.1} parent=11 // pred_fallthru
        _
      // Predicated region
      $region41: #{gpg2_forward.1} parent=11 // pred_check
        %p440 = pneg %p294
      $region42: #{gpg2_forward.1} parent=11 // pred_check_branch
        %442 = sbr.rel (%p440) target = $region44
      $region43: #{gpg2_forward.1} parent=11 // pred_region
        _
      $region44: #{gpg2_forward.1} parent=11 // pred_fallthru
        _
      // Predicated region
      $region45: #{gpg2_forward.1} parent=11 // pred_check
        %p443 = pneg %p315
      $region46: #{gpg2_forward.1} parent=11 // pred_check_branch
        %445 = sbr.rel (%p443) target = $region48
      $region47: #{gpg2_forward.1} parent=11 // pred_region
        _
      $region48: #{gpg2_forward.1} parent=11 // pred_fallthru
        _
      // Predicated region
      $region49: #{gpg2_forward.1} parent=11 // pred_check
        %p446 = pneg %p336
      $region50: #{gpg2_forward.1} parent=11 // pred_check_branch
        %448 = sbr.rel (%p446) target = $region52
      $region51: #{gpg2_forward.1} parent=11 // pred_region
        _
      $region52: #{gpg2_forward.1} parent=11 // pred_fallthru
        _
      // Predicated region
      $region53: #{gpg2_forward.1} parent=11 // pred_check
        %p449 = pneg %p357
      $region54: #{gpg2_forward.1} parent=11 // pred_check_branch
        %451 = sbr.rel (%p449) target = $region56
      $region55: #{gpg2_forward.1} parent=11 // pred_region
        _
      $region56: #{gpg2_forward.1} parent=11 // pred_fallthru
        _
      // Predicated region
      $region57: #{gpg2_forward.1} parent=11 // pred_check
        %p452 = pneg %p378
      $region58: #{gpg2_forward.1} parent=11 // pred_check_branch
        %454 = sbr.rel (%p452) target = $region60
      $region59: #{gpg2_forward.1} parent=11 // pred_region
        _
      $region60: #{gpg2_forward.1} parent=11 // pred_fallthru
        _
    $region12: #{gpg2_forward.1} parent=5 // pred_fallthru
      _
    %p455 = scmp.lt.s32.totalorder %s22, 2
    // Predicated region
    $region61: #{gpg2_forward.1} parent=5 // pred_check
      %p456 = pneg %p455
    $region62: #{gpg2_forward.1} parent=5 // pred_check_branch
      %458 = sbr.rel (%p456) target = $region64
    $region63: #{gpg2_forward.1} parent=5 // pred_region
      // Predicated region
      $region65: #{gpg2_forward.1} parent=63 // pred_check
        %p459 = pneg %p42
      $region66: #{gpg2_forward.1} parent=63 // pred_check_branch
        %461 = sbr.rel (%p459) target = $region68
      $region67: #{gpg2_forward.1} parent=63 // pred_region
        %p462 = scmp.lt.s32.totalorder %s22, 1
        %s463 = scalar_select %p462, %s22, 1
        %s464 = smul.addr %s463, 18
        %s465 = smul.addr %s464, 4
        %s466 = scalar_lea.vmem %s0, %s465
      $region68: #{gpg2_forward.1} parent=63 // pred_fallthru
        _
      // Predicated region
      $region69: #{gpg2_forward.1} parent=63 // pred_check
        %p467 = pneg %p68
      $region70: #{gpg2_forward.1} parent=63 // pred_check_branch
        %469 = sbr.rel (%p467) target = $region72
      $region71: #{gpg2_forward.1} parent=63 // pred_region
        %p470 = scmp.lt.s32.totalorder %s22, 1
        %s471 = scalar_select %p470, %s22, 1
        %s472 = smul.addr %s471, 16
        %s473 = smul.addr %s472, 4
        %s474 = scalar_lea.vmem %s1, %s473
      $region72: #{gpg2_forward.1} parent=63 // pred_fallthru
        _
      // Predicated region
      $region73: #{gpg2_forward.1} parent=63 // pred_check
        %p475 = pneg %p94
      $region74: #{gpg2_forward.1} parent=63 // pred_check_branch
        %477 = sbr.rel (%p475) target = $region76
      $region75: #{gpg2_forward.1} parent=63 // pred_region
        %p478 = scmp.lt.s32.totalorder %s22, 1
        %s479 = scalar_select %p478, %s22, 1
        %s480 = smul.addr %s479, 6
        %s481 = smul.addr %s480, 4
        %s482 = scalar_lea.vmem %s2, %s481
      $region76: #{gpg2_forward.1} parent=63 // pred_fallthru
        _
      // Predicated region
      $region77: #{gpg2_forward.1} parent=63 // pred_check
        %p483 = pneg %p120
      $region78: #{gpg2_forward.1} parent=63 // pred_check_branch
        %485 = sbr.rel (%p483) target = $region80
      $region79: #{gpg2_forward.1} parent=63 // pred_region
        %p486 = scmp.lt.s32.totalorder %s22, 1
        %s487 = scalar_select %p486, %s22, 1
        %s488 = smul.addr %s487, 5
        %s489 = smul.addr %s488, 2
        %s490 = scalar_lea.vmem %s3, %s489
      $region80: #{gpg2_forward.1} parent=63 // pred_fallthru
        _
    $region64: #{gpg2_forward.1} parent=5 // pred_fallthru
      _
    %p491 = scmp.le.s32.totalorder 1, %s22
    %p492 = scmp.lt.s32.totalorder %s22, 3
    %p493 = pnand %p491, %p492
    %p494 = pneg %p493
    // Predicated region
    $region81: #{gpg2_forward.1} parent=5 // pred_check
      _
    $region82: #{gpg2_forward.1} parent=5 // pred_check_branch
      %496 = sbr.rel (%p493) target = $region84
    $region83: #{gpg2_forward.1} parent=5 // pred_region
      %s497 = ssub.s32 %s22, 1
      %p498 = scmp.lt.s32.totalorder %s27, 1
      %s499 = scalar_select %p498, %s27, 1
      %s500 = smul.addr %s499, 18
      %s501 = smul.addr %s500, 4
      %s502 = scalar_lea.vmem %s0, %s501
      %p503 = pneg %p48
      %p504 = pneg %p45
      %p505 = scmp.lt.s32.totalorder %s27, 1
      %s506 = scalar_select %p505, %s27, 1
      %s507 = smul.addr %s506, 16
      %s508 = smul.addr %s507, 4
      %s509 = scalar_lea.vmem %s1, %s508
      %p510 = pneg %p74
      %p511 = pneg %p71
      %p512 = scmp.lt.s32.totalorder %s27, 1
      %s513 = scalar_select %p512, %s27, 1
      %s514 = smul.addr %s513, 6
      %s515 = smul.addr %s514, 4
      %s516 = scalar_lea.vmem %s2, %s515
      %p517 = pneg %p100
      %p518 = pneg %p97
      %p519 = scmp.lt.s32.totalorder %s27, 1
      %s520 = scalar_select %p519, %s27, 1
      %s521 = smul.addr %s520, 5
      %s522 = smul.addr %s521, 2
      %s523 = scalar_lea.vmem %s3, %s522
      %p524 = pneg %p126
      %p525 = pneg %p123
      %p526 = pneg %p147
      %p527 = pneg %p144
      %p528 = pneg %p168
      %p529 = pneg %p165
      %p530 = pneg %p189
      %p531 = pneg %p186
      %p532 = pneg %p210
      %p533 = pneg %p207
      %p534 = pneg %p231
      %p535 = pneg %p228
      %p536 = pneg %p252
      %p537 = pneg %p249
      %p538 = pneg %p273
      %p539 = pneg %p270
      %p540 = pneg %p294
      %p541 = pneg %p291
      %p542 = pneg %p315
      %p543 = pneg %p312
      %p544 = pneg %p336
      %p545 = pneg %p333
      %p546 = pneg %p357
      %p547 = pneg %p354
      %p548 = pneg %p378
      %p549 = pneg %p375
      %p550 = pneg %p404
      %p551 = pneg %p401
      %p552 = scmp.lt.s32.totalorder %s27, 1
      %s553 = scalar_select %p552, %s27, 1
      %s554 = smul.addr %s553, 8
      %s555 = smul.addr %s554, 8
      %s556 = scalar_lea.vmem %s16, %s555
      %p557 = scmp.lt.s32.totalorder %s27, 1
      %s558 = scalar_select %p557, %s27, 1
      %s559 = smul.addr %s558, 18
      %s560 = smul.addr %s559, 4
      %s561 = scalar_lea.vmem %s0, %s560
      %p562 = scmp.lt.s32.totalorder %s27, 1
      %s563 = scalar_select %p562, %s27, 1
      %s564 = smul.addr %s563, 16
      %s565 = smul.addr %s564, 4
      %s566 = scalar_lea.vmem %s1, %s565
      %p567 = scmp.lt.s32.totalorder %s27, 1
      %s568 = scalar_select %p567, %s27, 1
      %s569 = smul.addr %s568, 6
      %s570 = smul.addr %s569, 4
      %s571 = scalar_lea.vmem %s2, %s570
      %p572 = scmp.lt.s32.totalorder %s27, 1
      %s573 = scalar_select %p572, %s27, 1
      %s574 = smul.addr %s573, 5
      %s575 = smul.addr %s574, 2
      %s576 = scalar_lea.vmem %s3, %s575
      %p577 = scmp.lt.s32.totalorder %s27, 1
      %s578 = scalar_select %p577, %s27, 1
      %s579 = smul.addr %s578, 8
      %s580 = smul.addr %s579, 8
      %s581 = scalar_lea.vmem %s16, %s580
      %v583 = vld [vmem:[%s4] sm:$0xf]
      %v584 = vld [vmem:[%s4 + $0x4] sm:$0xf]
      %v585 = vld [vmem:[%s4 + $0x8] sm:$0xf]
      %v586 = vld [vmem:[%s4 + $0xc] sm:$0xf]
      %v587 = vld [vmem:[%s561] sm:$0xff]
      %v588 = vld [vmem:[%s561 + $0x8] sm:$0xff]
      %v589 = vld [vmem:[%s561 + $0x10] sm:$0xff]
      %v590 = vld [vmem:[%s561 + $0x18] sm:$0xff]
      %v591 = vld [vmem:[%s561 + $0x20] sm:$0xff]
      %v592 = vld [vmem:[%s561 + $0x28] sm:$0xff]
      %v593 = vld [vmem:[%s561 + $0x30] sm:$0xff]
      %v594 = vld [vmem:[%s561 + $0x38] sm:$0xff]
      %v595 = vld [vmem:[%s561 + $0x40] sm:$0xff]
      %v596 = vld [vmem:[%s8] sm:$0xff]
      %v597 = vld [vmem:[%s8 + $0x8] sm:$0xff]
      %v598 = vld [vmem:[%s8 + $0x10] sm:$0xff]
      %v599 = vld [vmem:[%s8 + $0x18] sm:$0xff]
      %601 = vset.pattern.permute.xlu0 0
      %602 = vperm.xlu0 %601, %v596
      %v603 = vpop.permute.xlu0 %602
      %606 = vset.pattern.permute.xlu0 0
      %607 = vperm.xlu0 %606, %v597
      %v608 = vpop.permute.xlu0 %607
      %611 = vset.pattern.permute.xlu0 0
      %612 = vperm.xlu0 %611, %v598
      %v613 = vpop.permute.xlu0 %612
      %616 = vset.pattern.permute.xlu0 0
      %617 = vperm.xlu0 %616, %v599
      %v618 = vpop.permute.xlu0 %617
      %v624 = vunpack.c.l.b16 %v583
      %v625 = vunpack.c.l.b16 %v584
      %v626 = vunpack.c.l.b16 %v585
      %v627 = vunpack.c.l.b16 %v586
      %v628 = vpack.c.b16 %v625, %v624
      %v629 = vpack.c.b16 %v627, %v626
      %v639 = vunpack.c.l.b16 %v587
      %v640 = vunpack.c.h.b16 %v587
      %v641 = vunpack.c.l.b16 %v588
      %v642 = vunpack.c.h.b16 %v588
      %v643 = vunpack.c.l.b16 %v589
      %v644 = vunpack.c.h.b16 %v589
      %v645 = vunpack.c.l.b16 %v590
      %v646 = vunpack.c.h.b16 %v590
      %v647 = vunpack.c.l.b16 %v591
      %v648 = vunpack.c.h.b16 %v591
      %v649 = vunpack.c.l.b16 %v592
      %v650 = vunpack.c.h.b16 %v592
      %v651 = vunpack.c.l.b16 %v593
      %v652 = vunpack.c.h.b16 %v593
      %v653 = vunpack.c.l.b16 %v594
      %v654 = vunpack.c.h.b16 %v594
      %v655 = vunpack.c.l.b16 %v595
      %v656 = vunpack.c.h.b16 %v595
      %v657 = vpack.c.b16 %v641, %v639
      %v658 = vpack.c.b16 %v642, %v640
      %v659 = vpack.c.b16 %v645, %v643
      %v660 = vpack.c.b16 %v646, %v644
      %v661 = vpack.c.b16 %v649, %v647
      %v662 = vpack.c.b16 %v650, %v648
      %v663 = vpack.c.b16 %v653, %v651
      %v664 = vpack.c.b16 %v654, %v652
      %v665 = vpack.c.b16 %v655, %v655
      %v666 = vpack.c.b16 %v656, %v656
      %vm675 = vcmask 588800
      %v677 = vsel %vm675, %v628, 0
      %v680 = vsel %vm675, %v629, 0
      %vm682 = vcmask 1043456
      %v684 = vsel %vm682, %v665, 0
      %v687 = vsel %vm682, %v666, 0
      %689 = vmatprep.subr.bf16.mxu0 %v658
      %690 = vmatpush1.bf16.msra.mxu0 %v657
      %691 = vmatprep.subr.bf16.mxu0 %v660
      %692 = vmatpush1.bf16.msra.mxu0 %v659
      %693 = vmatprep.subr.bf16.mxu0 %v662
      %694 = vmatpush1.bf16.msra.mxu0 %v661
      %695 = vmatprep.subr.bf16.mxu0 %v664
      %696 = vmatpush1.bf16.msra.mxu0 %v663
      %697 = vmatprep.subr.bf16.mxu0 %v687
      %698 = vmatpush1.bf16.msra.mxu0 %v684
      %699 = vmatprep.subr.bf16.mxu0 0
      %700 = vmatpush1.bf16.msra.mxu0 0
      %701 = vmatprep.subr.bf16.mxu0 0
      %702 = vmatpush1.bf16.msra.mxu0 0
      %703 = vmatprep.subr.bf16.mxu0 0
      %704 = vmatpush1.bf16.msra.mxu0 0
      %705 = vmatprep.subr.bf16.mxu0 0
      %706 = vmatpush1.bf16.msra.mxu0 0
      %707 = vmatprep.subr.bf16.mxu0 0
      %708 = vmatpush1.bf16.msra.mxu0 0
      %709 = vmatprep.subr.bf16.mxu0 0
      %710 = vmatpush1.bf16.msra.mxu0 0
      %711 = vmatprep.subr.bf16.mxu0 0
      %712 = vmatpush1.bf16.msra.mxu0 0
      %713 = vmatprep.subr.bf16.mxu0 0
      %714 = vmatpush1.bf16.msra.mxu0 0
      %715 = vmatprep.subr.bf16.mxu0 0
      %716 = vmatpush1.bf16.msra.mxu0 0
      %717 = vmatprep.subr.bf16.mxu0 0
      %718 = vmatpush1.bf16.msra.mxu0 0
      %719 = vmatprep.subr.bf16.mxu0 0
      %720 = vmatpush1.bf16.msra.mxu0 0
      %721 = vmatprep.mubr.bf16.mxu0 0
      %722 = vmatmul.mubr.bf16.gmra.mrb[0].mxu0 %v677
      %v723 = vpop.f32.mrb[0].mxu0
      %v724 = vadd.f32 %v603, %v723
      %v725 = vpop.f32.mrb[0].mxu0
      %v726 = vadd.f32 %v603, %v725
      %v727 = vpop.f32.mrb[0].mxu0
      %v728 = vadd.f32 %v608, %v727
      %v729 = vpop.f32.mrb[0].mxu0
      %v730 = vadd.f32 %v608, %v729
      %731 = vmatprep.mubr.bf16.mxu0 0
      %732 = vmatmul.mubr.bf16.gmra.mrb[0].mxu0 %v680
      %v733 = vpop.f32.mrb[0].mxu0
      %v734 = vadd.f32 %v613, %v733
      %v735 = vpop.f32.mrb[0].mxu0
      %v736 = vadd.f32 %v613, %v735
      %v737 = vpop.f32.mrb[0].mxu0
      %v738 = vadd.f32 %v618, %v737
      %v739 = vpop.f32.mrb[0].mxu0
      %v740 = vadd.f32 %v618, %v739
      %741 = vdwg.mxu0
      %v742 = vmax.f32 %v724, 0.0
      %v743 = vmax.f32 %v726, 0.0
      %v744 = vmax.f32 %v728, 0.0
      %v745 = vmax.f32 %v730, 0.0
      %v746 = vmax.f32 %v734, 0.0
      %v747 = vmax.f32 %v736, 0.0
      %v748 = vmax.f32 %v738, 0.0
      %v749 = vmax.f32 %v740, 0.0
      %v750 = vld [vmem:[%s5] sm:$0xff]
      %v751 = vld [vmem:[%s5 + $0x8] sm:$0xff]
      %v752 = vld [vmem:[%s5 + $0x10] sm:$0xff]
      %v753 = vld [vmem:[%s5 + $0x18] sm:$0xff]
      %v754 = vld [vmem:[%s566] sm:$0xff]
      %v755 = vld [vmem:[%s566 + $0x8] sm:$0xff]
      %v756 = vld [vmem:[%s566 + $0x10] sm:$0xff]
      %v757 = vld [vmem:[%s566 + $0x18] sm:$0xff]
      %v758 = vld [vmem:[%s566 + $0x20] sm:$0xff]
      %v759 = vld [vmem:[%s566 + $0x28] sm:$0xff]
      %v760 = vld [vmem:[%s566 + $0x30] sm:$0xff]
      %v761 = vld [vmem:[%s566 + $0x38] sm:$0xff]
      %s762 = scalar_lea.vmem %s8, 32
      %v763 = vld [vmem:[%s762] sm:$0xff]
      %v764 = vld [vmem:[%s762 + $0x8] sm:$0xff]
      %v765 = vld [vmem:[%s762 + $0x10] sm:$0xff]
      %v766 = vld [vmem:[%s762 + $0x18] sm:$0xff]
      %768 = vset.pattern.permute.xlu0 0
      %769 = vperm.xlu0 %768, %v763
      %v770 = vpop.permute.xlu0 %769
      %773 = vset.pattern.permute.xlu0 0
      %774 = vperm.xlu0 %773, %v764
      %v775 = vpop.permute.xlu0 %774
      %778 = vset.pattern.permute.xlu0 0
      %779 = vperm.xlu0 %778, %v765
      %v780 = vpop.permute.xlu0 %779
      %783 = vset.pattern.permute.xlu0 0
      %784 = vperm.xlu0 %783, %v766
      %v785 = vpop.permute.xlu0 %784
      %v791 = vunpack.c.l.b16 %v750
      %v792 = vunpack.c.h.b16 %v750
      %v793 = vunpack.c.l.b16 %v751
      %v794 = vunpack.c.h.b16 %v751
      %v795 = vunpack.c.l.b16 %v752
      %v796 = vunpack.c.h.b16 %v752
      %v797 = vunpack.c.l.b16 %v753
      %v798 = vunpack.c.h.b16 %v753
      %v799 = vpack.c.b16 %v793, %v791
      %v800 = vpack.c.b16 %v794, %v792
      %v801 = vpack.c.b16 %v797, %v795
      %v802 = vpack.c.b16 %v798, %v796
      %v813 = vunpack.c.l.b16 %v754
      %v814 = vunpack.c.h.b16 %v754
      %v815 = vunpack.c.l.b16 %v755
      %v816 = vunpack.c.h.b16 %v755
      %v817 = vunpack.c.l.b16 %v756
      %v818 = vunpack.c.h.b16 %v756
      %v819 = vunpack.c.l.b16 %v757
      %v820 = vunpack.c.h.b16 %v757
      %v821 = vunpack.c.l.b16 %v758
      %v822 = vunpack.c.h.b16 %v758
      %v823 = vunpack.c.l.b16 %v759
      %v824 = vunpack.c.h.b16 %v759
      %v825 = vunpack.c.l.b16 %v760
      %v826 = vunpack.c.h.b16 %v760
      %v827 = vunpack.c.l.b16 %v761
      %v828 = vunpack.c.h.b16 %v761
      %v829 = vpack.c.b16 %v815, %v813
      %v830 = vpack.c.b16 %v816, %v814
      %v831 = vpack.c.b16 %v819, %v817
      %v832 = vpack.c.b16 %v820, %v818
      %v833 = vpack.c.b16 %v823, %v821
      %v834 = vpack.c.b16 %v824, %v822
      %v835 = vpack.c.b16 %v827, %v825
      %v836 = vpack.c.b16 %v828, %v826
      %vm841 = vcmask 130048
      %v843 = vsel %vm841, %v800, 0
      %v846 = vsel %vm841, %v802, 0
      %v849 = vsel %vm841, %v830, 0
      %v852 = vsel %vm841, %v832, 0
      %v855 = vsel %vm841, %v834, 0
      %v858 = vsel %vm841, %v836, 0
      %860 = vmatprep.subr.bf16.mxu0 %v849
      %861 = vmatpush1.bf16.xpose.msra.mxu0 %v829
      %862 = vmatprep.subr.bf16.mxu0 %v852
      %863 = vmatpush1.bf16.xpose.msra.mxu0 %v831
      %864 = vmatprep.subr.bf16.mxu0 %v855
      %865 = vmatpush1.bf16.xpose.msra.mxu0 %v833
      %866 = vmatprep.subr.bf16.mxu0 %v858
      %867 = vmatpush1.bf16.xpose.msra.mxu0 %v835
      %868 = vmatprep.subr.bf16.mxu0 0
      %869 = vmatpush1.bf16.xpose.msra.mxu0 0
      %870 = vmatprep.subr.bf16.mxu0 0
      %871 = vmatpush1.bf16.xpose.msra.mxu0 0
      %872 = vmatprep.subr.bf16.mxu0 0
      %873 = vmatpush1.bf16.xpose.msra.mxu0 0
      %874 = vmatprep.subr.bf16.mxu0 0
      %875 = vmatpush1.bf16.xpose.msra.mxu0 0
      %876 = vmatprep.subr.bf16.mxu0 0
      %877 = vmatpush1.bf16.xpose.msra.mxu0 0
      %878 = vmatprep.subr.bf16.mxu0 0
      %879 = vmatpush1.bf16.xpose.msra.mxu0 0
      %880 = vmatprep.subr.bf16.mxu0 0
      %881 = vmatpush1.bf16.xpose.msra.mxu0 0
      %882 = vmatprep.subr.bf16.mxu0 0
      %883 = vmatpush1.bf16.xpose.msra.mxu0 0
      %884 = vmatprep.subr.bf16.mxu0 0
      %885 = vmatpush1.bf16.xpose.msra.mxu0 0
      %886 = vmatprep.subr.bf16.mxu0 0
      %887 = vmatpush1.bf16.xpose.msra.mxu0 0
      %888 = vmatprep.subr.bf16.mxu0 0
      %889 = vmatpush1.bf16.xpose.msra.mxu0 0
      %890 = vmatprep.subr.bf16.mxu0 0
      %891 = vmatpush1.bf16.xpose.msra.mxu0 0
      %892 = vmatprep.mubr.bf16.mxu0 %v843
      %893 = vmatmul.mubr.bf16.gmra.mrb[0].mxu0 %v799
      %v894 = vpop.f32.mrb[0].mxu0
      %v895 = vadd.f32 %v770, %v894
      %v896 = vpop.f32.mrb[0].mxu0
      %v897 = vpop.f32.mrb[0].mxu0
      %v898 = vadd.f32 %v775, %v897
      %v899 = vpop.f32.mrb[0].mxu0
      %900 = vmatprep.mubr.bf16.mxu0 %v846
      %901 = vmatmul.mubr.bf16.gmra.mrb[0].mxu0 %v801
      %v902 = vpop.f32.mrb[0].mxu0
      %v903 = vadd.f32 %v780, %v902
      %v904 = vpop.f32.mrb[0].mxu0
      %v905 = vpop.f32.mrb[0].mxu0
      %v906 = vadd.f32 %v785, %v905
      %v907 = vpop.f32.mrb[0].mxu0
      %908 = vdwg.mxu0
      %v909 = vmax.f32 %v895, 0.0
      %v910 = vmax.f32 %v898, 0.0
      %v911 = vmax.f32 %v903, 0.0
      %v912 = vmax.f32 %v906, 0.0
      %v913 = vld [vmem:[%s6] sm:$0xff]
      %v914 = vld [vmem:[%s6 + $0x8] sm:$0xf]
      %v915 = vld [vmem:[%s6 + $0xc] sm:$0xff]
      %v916 = vld [vmem:[%s6 + $0x14] sm:$0xf]
      %v917 = vld [vmem:[%s6 + $0x18] sm:$0xff]
      %v918 = vld [vmem:[%s6 + $0x20] sm:$0xf]
      %v919 = vld [vmem:[%s6 + $0x24] sm:$0xff]
      %v920 = vld [vmem:[%s6 + $0x2c] sm:$0xf]
      %v921 = vld [vmem:[%s571] sm:$0xff]
      %v922 = vld [vmem:[%s571 + $0x8] sm:$0xf]
      %v923 = vld [vmem:[%s571 + $0xc] sm:$0xff]
      %v924 = vld [vmem:[%s571 + $0x14] sm:$0xf]
      %s925 = scalar_lea.vmem %s8, 64
      %v926 = vld [vmem:[%s925] sm:$0xff]
      %v927 = vld [vmem:[%s925 + $0x8] sm:$0xff]
      %v928 = vld [vmem:[%s925 + $0x10] sm:$0xff]
      %v929 = vld [vmem:[%s925 + $0x18] sm:$0xff]
      %931 = vset.pattern.permute.xlu0 0
      %932 = vperm.xlu0 %931, %v926
      %v933 = vpop.permute.xlu0 %932
      %936 = vset.pattern.permute.xlu0 0
      %937 = vperm.xlu0 %936, %v927
      %v938 = vpop.permute.xlu0 %937
      %941 = vset.pattern.permute.xlu0 0
      %942 = vperm.xlu0 %941, %v928
      %v943 = vpop.permute.xlu0 %942
      %946 = vset.pattern.permute.xlu0 0
      %947 = vperm.xlu0 %946, %v929
      %v948 = vpop.permute.xlu0 %947
      %v958 = vunpack.c.l.b16 %v913
      %v959 = vunpack.c.h.b16 %v913
      %v960 = vunpack.c.l.b16 %v914
      %v961 = vunpack.c.l.b16 %v915
      %v962 = vunpack.c.h.b16 %v915
      %v963 = vunpack.c.l.b16 %v916
      %v964 = vunpack.c.l.b16 %v917
      %v965 = vunpack.c.h.b16 %v917
      %v966 = vunpack.c.l.b16 %v918
      %v967 = vunpack.c.l.b16 %v919
      %v968 = vunpack.c.h.b16 %v919
      %v969 = vunpack.c.l.b16 %v920
      %v970 = vpack.c.b16 %v961, %v958
      %v971 = vpack.c.b16 %v962, %v959
      %v972 = vpack.c.b16 %v963, %v960
      %v973 = vpack.c.b16 %v967, %v964
      %v974 = vpack.c.b16 %v968, %v965
      %v975 = vpack.c.b16 %v969, %v966
      %v984 = vunpack.c.l.b16 %v921
      %v985 = vunpack.c.h.b16 %v921
      %v986 = vunpack.c.l.b16 %v922
      %v987 = vunpack.c.l.b16 %v923
      %v988 = vunpack.c.h.b16 %v923
      %v989 = vunpack.c.l.b16 %v924
      %v990 = vpack.c.b16 %v987, %v984
      %v991 = vpack.c.b16 %v988, %v985
      %v992 = vpack.c.b16 %v989, %v986
      %vm995 = vcmask 261120
      %v997 = vsel %vm995, %v972, 0
      %v1000 = vsel %vm995, %v975, 0
      %v1003 = vsel %vm995, %v992, 0
      %1005 = vmatprep.subr.bf16.mxu0 %v991
      %1006 = vmatpush1.bf16.xpose.msra.mxu0 %v990
      %1007 = vmatprep.subr.bf16.mxu0 0
      %1008 = vmatpush1.bf16.xpose.msra.mxu0 0
      %1009 = vmatprep.subr.bf16.mxu0 0
      %1010 = vmatpush1.bf16.xpose.msra.mxu0 0
      %1011 = vmatprep.subr.bf16.mxu0 0
      %1012 = vmatpush1.bf16.xpose.msra.mxu0 0
      %1013 = vmatprep.subr.bf16.mxu0 0
      %1014 = vmatpush1.bf16.xpose.msra.mxu0 0
      %1015 = vmatprep.subr.bf16.mxu0 0
      %1016 = vmatpush1.bf16.xpose.msra.mxu0 0
      %1017 = vmatprep.subr.bf16.mxu0 0
      %1018 = vmatpush1.bf16.xpose.msra.mxu0 0
      %1019 = vmatprep.subr.bf16.mxu0 0
      %1020 = vmatpush1.bf16.xpose.msra.mxu0 0
      %1021 = vmatprep.subr.bf16.mxu0 0
      %1022 = vmatpush1.bf16.xpose.msra.mxu0 0
      %1023 = vmatprep.subr.bf16.mxu0 0
      %1024 = vmatpush1.bf16.xpose.msra.mxu0 0
      %1025 = vmatprep.subr.bf16.mxu0 0
      %1026 = vmatpush1.bf16.xpose.msra.mxu0 0
      %1027 = vmatprep.subr.bf16.mxu0 0
      %1028 = vmatpush1.bf16.xpose.msra.mxu0 0
      %1029 = vmatprep.subr.bf16.mxu0 0
      %1030 = vmatpush1.bf16.xpose.msra.mxu0 0
      %1031 = vmatprep.subr.bf16.mxu0 0
      %1032 = vmatpush1.bf16.xpose.msra.mxu0 0
      %1033 = vmatprep.subr.bf16.mxu0 0
      %1034 = vmatpush1.bf16.xpose.msra.mxu0 0
      %1035 = vmatprep.subr.bf16.mxu0 0
      %1036 = vmatpush1.bf16.xpose.msra.mxu0 0
      %1037 = vmatprep.mubr.bf16.mxu0 %v971
      %1038 = vmatmul.mubr.bf16.gmra.mrb[0].mxu0 %v970
      %v1039 = vpop.f32.mrb[0].mxu0
      %v1040 = vadd.f32 %v933, %v1039
      %v1041 = vpop.f32.mrb[0].mxu0
      %v1042 = vpop.f32.mrb[0].mxu0
      %v1043 = vadd.f32 %v938, %v1042
      %v1044 = vpop.f32.mrb[0].mxu0
      %1045 = vmatprep.mubr.bf16.mxu0 %v974
      %1046 = vmatmul.mubr.bf16.gmra.mrb[0].mxu0 %v973
      %v1047 = vpop.f32.mrb[0].mxu0
      %v1048 = vadd.f32 %v943, %v1047
      %v1049 = vpop.f32.mrb[0].mxu0
      %v1050 = vpop.f32.mrb[0].mxu0
      %v1051 = vadd.f32 %v948, %v1050
      %v1052 = vpop.f32.mrb[0].mxu0
      %1053 = vdwg.mxu0
      %1054 = vmatprep.subr.bf16.mxu0 0
      %1055 = vmatpush1.bf16.xpose.msra.mxu0 %v1003
      %1056 = vmatprep.subr.bf16.mxu0 0
      %1057 = vmatpush1.bf16.xpose.msra.mxu0 0
      %1058 = vmatprep.subr.bf16.mxu0 0
      %1059 = vmatpush1.bf16.xpose.msra.mxu0 0
      %1060 = vmatprep.subr.bf16.mxu0 0
      %1061 = vmatpush1.bf16.xpose.msra.mxu0 0
      %1062 = vmatprep.subr.bf16.mxu0 0
      %1063 = vmatpush1.bf16.xpose.msra.mxu0 0
      %1064 = vmatprep.subr.bf16.mxu0 0
      %1065 = vmatpush1.bf16.xpose.msra.mxu0 0
      %1066 = vmatprep.subr.bf16.mxu0 0
      %1067 = vmatpush1.bf16.xpose.msra.mxu0 0
      %1068 = vmatprep.subr.bf16.mxu0 0
      %1069 = vmatpush1.bf16.xpose.msra.mxu0 0
      %1070 = vmatprep.subr.bf16.mxu0 0
      %1071 = vmatpush1.bf16.xpose.msra.mxu0 0
      %1072 = vmatprep.subr.bf16.mxu0 0
      %1073 = vmatpush1.bf16.xpose.msra.mxu0 0
      %1074 = vmatprep.subr.bf16.mxu0 0
      %1075 = vmatpush1.bf16.xpose.msra.mxu0 0
      %1076 = vmatprep.subr.bf16.mxu0 0
      %1077 = vmatpush1.bf16.xpose.msra.mxu0 0
      %1078 = vmatprep.subr.bf16.mxu0 0
      %1079 = vmatpush1.bf16.xpose.msra.mxu0 0
      %1080 = vmatprep.subr.bf16.mxu0 0
      %1081 = vmatpush1.bf16.xpose.msra.mxu0 0
      %1082 = vmatprep.subr.bf16.mxu0 0
      %1083 = vmatpush1.bf16.xpose.msra.mxu0 0
      %1084 = vmatprep.subr.bf16.mxu0 0
      %1085 = vmatpush1.bf16.xpose.msra.mxu0 0
      %1086 = vmatprep.mubr.bf16.mxu0 0
      %1087 = vmatmul.mubr.bf16.gmra.mrb[0].mxu0 %v997
      %v1088 = vpop.f32.mrb[0].mxu0
      %v1089 = vadd.f32 %v1040, %v1088
      %v1090 = vpop.f32.mrb[0].mxu0
      %v1091 = vpop.f32.mrb[0].mxu0
      %v1092 = vadd.f32 %v1043, %v1091
      %v1093 = vpop.f32.mrb[0].mxu0
      %1094 = vmatprep.mubr.bf16.mxu0 0
      %1095 = vmatmul.mubr.bf16.gmra.mrb[0].mxu0 %v1000
      %v1096 = vpop.f32.mrb[0].mxu0
      %v1097 = vadd.f32 %v1048, %v1096
      %v1098 = vpop.f32.mrb[0].mxu0
      %v1099 = vpop.f32.mrb[0].mxu0
      %v1100 = vadd.f32 %v1051, %v1099
      %v1101 = vpop.f32.mrb[0].mxu0
      %1102 = vdwg.mxu0
      %v1103 = vmax.f32 %v1089, 0.0
      %v1104 = vmax.f32 %v1092, 0.0
      %v1105 = vmax.f32 %v1097, 0.0
      %v1106 = vmax.f32 %v1100, 0.0
      %v1107 = vld [vmem:[%s7] sm:$0xff]
      %v1108 = vld [vmem:[%s7 + $0x8] sm:$0xff]
      %v1109 = vld [vmem:[%s7 + $0x10] sm:$0xf]
      %v1110 = vld [vmem:[%s7 + $0x14] sm:$0xff]
      %v1111 = vld [vmem:[%s7 + $0x1c] sm:$0xff]
      %v1112 = vld [vmem:[%s7 + $0x24] sm:$0xf]
      %v1113 = vld [vmem:[%s7 + $0x28] sm:$0xff]
      %v1114 = vld [vmem:[%s7 + $0x30] sm:$0xff]
      %v1115 = vld [vmem:[%s7 + $0x38] sm:$0xf]
      %v1116 = vld [vmem:[%s7 + $0x3c] sm:$0xff]
      %v1117 = vld [vmem:[%s7 + $0x44] sm:$0xff]
      %v1118 = vld [vmem:[%s7 + $0x4c] sm:$0xf]
      %v1119 = vld [vmem:[%s576] sm:$0xff]
      %v1120 = vld [vmem:[%s576 + $0x8] sm:$0x3]
      %s1121 = scalar_lea.vmem %s8, 96
      %v1122 = vld [vmem:[%s1121] sm:$0xff]
      %v1123 = vld [vmem:[%s1121 + $0x8] sm:$0xff]
      %v1124 = vld [vmem:[%s1121 + $0x10] sm:$0xff]
      %v1125 = vld [vmem:[%s1121 + $0x18] sm:$0xff]
      %1127 = vset.pattern.permute.xlu0 0
      %1128 = vperm.xlu0 %1127, %v1122
      %v1129 = vpop.permute.xlu0 %1128
      %1132 = vset.pattern.permute.xlu0 0
      %1133 = vperm.xlu0 %1132, %v1123
      %v1134 = vpop.permute.xlu0 %1133
      %1137 = vset.pattern.permute.xlu0 0
      %1138 = vperm.xlu0 %1137, %v1124
      %v1139 = vpop.permute.xlu0 %1138
      %1142 = vset.pattern.permute.xlu0 0
      %1143 = vperm.xlu0 %1142, %v1125
      %v1144 = vpop.permute.xlu0 %1143
      %v1158 = vunpack.c.l.b16 %v1107
      %v1159 = vunpack.c.h.b16 %v1107
      %v1160 = vunpack.c.l.b16 %v1108
      %v1161 = vunpack.c.h.b16 %v1108
      %v1162 = vunpack.c.l.b16 %v1109
      %v1163 = vunpack.c.l.b16 %v1110
      %v1164 = vunpack.c.h.b16 %v1110
      %v1165 = vunpack.c.l.b16 %v1111
      %v1166 = vunpack.c.h.b16 %v1111
      %v1167 = vunpack.c.l.b16 %v1112
      %v1168 = vunpack.c.l.b16 %v1113
      %v1169 = vunpack.c.h.b16 %v1113
      %v1170 = vunpack.c.l.b16 %v1114
      %v1171 = vunpack.c.h.b16 %v1114
      %v1172 = vunpack.c.l.b16 %v1115
      %v1173 = vunpack.c.l.b16 %v1116
      %v1174 = vunpack.c.h.b16 %v1116
      %v1175 = vunpack.c.l.b16 %v1117
      %v1176 = vunpack.c.h.b16 %v1117
      %v1177 = vunpack.c.l.b16 %v1118
      %v1178 = vpack.c.b16 %v1163, %v1158
      %v1179 = vpack.c.b16 %v1164, %v1159
      %v1180 = vpack.c.b16 %v1165, %v1160
      %v1181 = vpack.c.b16 %v1166, %v1161
      %v1182 = vpack.c.b16 %v1167, %v1162
      %v1183 = vpack.c.b16 %v1173, %v1168
      %v1184 = vpack.c.b16 %v1174, %v1169
      %v1185 = vpack.c.b16 %v1175, %v1170
      %v1186 = vpack.c.b16 %v1176, %v1171
      %v1187 = vpack.c.b16 %v1177, %v1172
      %v1198 = vcombine.high %v1119, %v1119
      %v1200 = vunpack.c.l.s4 1983009808
      %v1201 = vunpack.c.0.s8 %v1200
      %v1202 = vlaneseq
      %v1203 = vshrl.u32 %v1202, 7
      %v1204 = vsub.s32 %v1201, %v1203
      %v1205 = vrot.slane %v1119, %v1204
      %v1207 = vunpack.c.l.s4 1983009808
      %v1208 = vunpack.c.0.s8 %v1207
      %v1209 = vlaneseq
      %v1210 = vshrl.u32 %v1209, 7
      %v1211 = vsub.s32 %v1208, %v1210
      %v1212 = vrot.slane %v1198, %v1211
      %v1213 = vcombine.high %v1205, %v1205
      %v1214 = vcombine.high %v1212, %v1212
      %v1216 = vunpack.c.l.s4 1983009808
      %v1217 = vunpack.c.0.s8 %v1216
      %v1218 = vlaneseq
      %v1219 = vshrl.u32 %v1218, 7
      %v1220 = vsub.s32 %v1217, %v1219
      %v1221 = vrot.slane %v1120, %v1220
      %vm1226 = vcmask 523264
      %v1228 = vsel %vm1226, %v1182, 0
      %v1231 = vsel %vm1226, %v1187, 0
      %v1234 = vsel %vm1226, %v1221, 0
      %1236 = vmatprep.subr.bf16.mxu0 %v1213
      %1237 = vmatpush1.bf16.xpose.msra.mxu0 %v1205
      %1238 = vmatprep.subr.bf16.mxu0 0
      %1239 = vmatpush1.bf16.xpose.msra.mxu0 0
      %1240 = vmatprep.subr.bf16.mxu0 0
      %1241 = vmatpush1.bf16.xpose.msra.mxu0 0
      %1242 = vmatprep.subr.bf16.mxu0 0
      %1243 = vmatpush1.bf16.xpose.msra.mxu0 0
      %1244 = vmatprep.subr.bf16.mxu0 0
      %1245 = vmatpush1.bf16.xpose.msra.mxu0 0
      %1246 = vmatprep.subr.bf16.mxu0 0
      %1247 = vmatpush1.bf16.xpose.msra.mxu0 0
      %1248 = vmatprep.subr.bf16.mxu0 0
      %1249 = vmatpush1.bf16.xpose.msra.mxu0 0
      %1250 = vmatprep.subr.bf16.mxu0 0
      %1251 = vmatpush1.bf16.xpose.msra.mxu0 0
      %1252 = vmatprep.subr.bf16.mxu0 0
      %1253 = vmatpush1.bf16.xpose.msra.mxu0 0
      %1254 = vmatprep.subr.bf16.mxu0 0
      %1255 = vmatpush1.bf16.xpose.msra.mxu0 0
      %1256 = vmatprep.subr.bf16.mxu0 0
      %1257 = vmatpush1.bf16.xpose.msra.mxu0 0
      %1258 = vmatprep.subr.bf16.mxu0 0
      %1259 = vmatpush1.bf16.xpose.msra.mxu0 0
      %1260 = vmatprep.subr.bf16.mxu0 0
      %1261 = vmatpush1.bf16.xpose.msra.mxu0 0
      %1262 = vmatprep.subr.bf16.mxu0 0
      %1263 = vmatpush1.bf16.xpose.msra.mxu0 0
      %1264 = vmatprep.subr.bf16.mxu0 0
      %1265 = vmatpush1.bf16.xpose.msra.mxu0 0
      %1266 = vmatprep.subr.bf16.mxu0 0
      %1267 = vmatpush1.bf16.xpose.msra.mxu0 0
      %1268 = vmatprep.mubr.bf16.mxu0 %v1179
      %1269 = vmatmul.mubr.bf16.gmra.mrb[0].mxu0 %v1178
      %v1270 = vpop.f32.mrb[0].mxu0
      %v1271 = vadd.f32 %v1129, %v1270
      %v1272 = vpop.f32.mrb[0].mxu0
      %v1273 = vpop.f32.mrb[0].mxu0
      %v1274 = vadd.f32 %v1134, %v1273
      %v1275 = vpop.f32.mrb[0].mxu0
      %1276 = vmatprep.mubr.bf16.mxu0 %v1184
      %1277 = vmatmul.mubr.bf16.gmra.mrb[0].mxu0 %v1183
      %v1278 = vpop.f32.mrb[0].mxu0
      %v1279 = vadd.f32 %v1139, %v1278
      %v1280 = vpop.f32.mrb[0].mxu0
      %v1281 = vpop.f32.mrb[0].mxu0
      %v1282 = vadd.f32 %v1144, %v1281
      %v1283 = vpop.f32.mrb[0].mxu0
      %1284 = vdwg.mxu0
      %1285 = vmatprep.subr.bf16.mxu0 %v1214
      %1286 = vmatpush1.bf16.xpose.msra.mxu0 %v1212
      %1287 = vmatprep.subr.bf16.mxu0 0
      %1288 = vmatpush1.bf16.xpose.msra.mxu0 0
      %1289 = vmatprep.subr.bf16.mxu0 0
      %1290 = vmatpush1.bf16.xpose.msra.mxu0 0
      %1291 = vmatprep.subr.bf16.mxu0 0
      %1292 = vmatpush1.bf16.xpose.msra.mxu0 0
      %1293 = vmatprep.subr.bf16.mxu0 0
      %1294 = vmatpush1.bf16.xpose.msra.mxu0 0
      %1295 = vmatprep.subr.bf16.mxu0 0
      %1296 = vmatpush1.bf16.xpose.msra.mxu0 0
      %1297 = vmatprep.subr.bf16.mxu0 0
      %1298 = vmatpush1.bf16.xpose.msra.mxu0 0
      %1299 = vmatprep.subr.bf16.mxu0 0
      %1300 = vmatpush1.bf16.xpose.msra.mxu0 0
      %1301 = vmatprep.subr.bf16.mxu0 0
      %1302 = vmatpush1.bf16.xpose.msra.mxu0 0
      %1303 = vmatprep.subr.bf16.mxu0 0
      %1304 = vmatpush1.bf16.xpose.msra.mxu0 0
      %1305 = vmatprep.subr.bf16.mxu0 0
      %1306 = vmatpush1.bf16.xpose.msra.mxu0 0
      %1307 = vmatprep.subr.bf16.mxu0 0
      %1308 = vmatpush1.bf16.xpose.msra.mxu0 0
      %1309 = vmatprep.subr.bf16.mxu0 0
      %1310 = vmatpush1.bf16.xpose.msra.mxu0 0
      %1311 = vmatprep.subr.bf16.mxu0 0
      %1312 = vmatpush1.bf16.xpose.msra.mxu0 0
      %1313 = vmatprep.subr.bf16.mxu0 0
      %1314 = vmatpush1.bf16.xpose.msra.mxu0 0
      %1315 = vmatprep.subr.bf16.mxu0 0
      %1316 = vmatpush1.bf16.xpose.msra.mxu0 0
      %1317 = vmatprep.mubr.bf16.mxu0 %v1181
      %1318 = vmatmul.mubr.bf16.gmra.mrb[0].mxu0 %v1180
      %v1319 = vpop.f32.mrb[0].mxu0
      %v1320 = vadd.f32 %v1271, %v1319
      %v1321 = vpop.f32.mrb[0].mxu0
      %v1322 = vpop.f32.mrb[0].mxu0
      %v1323 = vadd.f32 %v1274, %v1322
      %v1324 = vpop.f32.mrb[0].mxu0
      %1325 = vmatprep.mubr.bf16.mxu0 %v1186
      %1326 = vmatmul.mubr.bf16.gmra.mrb[0].mxu0 %v1185
      %v1327 = vpop.f32.mrb[0].mxu0
      %v1328 = vadd.f32 %v1279, %v1327
      %v1329 = vpop.f32.mrb[0].mxu0
      %v1330 = vpop.f32.mrb[0].mxu0
      %v1331 = vadd.f32 %v1282, %v1330
      %v1332 = vpop.f32.mrb[0].mxu0
      %1333 = vdwg.mxu0
      %1334 = vmatprep.subr.bf16.mxu0 0
      %1335 = vmatpush1.bf16.xpose.msra.mxu0 %v1234
      %1336 = vmatprep.subr.bf16.mxu0 0
      %1337 = vmatpush1.bf16.xpose.msra.mxu0 0
      %1338 = vmatprep.subr.bf16.mxu0 0
      %1339 = vmatpush1.bf16.xpose.msra.mxu0 0
      %1340 = vmatprep.subr.bf16.mxu0 0
      %1341 = vmatpush1.bf16.xpose.msra.mxu0 0
      %1342 = vmatprep.subr.bf16.mxu0 0
      %1343 = vmatpush1.bf16.xpose.msra.mxu0 0
      %1344 = vmatprep.subr.bf16.mxu0 0
      %1345 = vmatpush1.bf16.xpose.msra.mxu0 0
      %1346 = vmatprep.subr.bf16.mxu0 0
      %1347 = vmatpush1.bf16.xpose.msra.mxu0 0
      %1348 = vmatprep.subr.bf16.mxu0 0
      %1349 = vmatpush1.bf16.xpose.msra.mxu0 0
      %1350 = vmatprep.subr.bf16.mxu0 0
      %1351 = vmatpush1.bf16.xpose.msra.mxu0 0
      %1352 = vmatprep.subr.bf16.mxu0 0
      %1353 = vmatpush1.bf16.xpose.msra.mxu0 0
      %1354 = vmatprep.subr.bf16.mxu0 0
      %1355 = vmatpush1.bf16.xpose.msra.mxu0 0
      %1356 = vmatprep.subr.bf16.mxu0 0
      %1357 = vmatpush1.bf16.xpose.msra.mxu0 0
      %1358 = vmatprep.subr.bf16.mxu0 0
      %1359 = vmatpush1.bf16.xpose.msra.mxu0 0
      %1360 = vmatprep.subr.bf16.mxu0 0
      %1361 = vmatpush1.bf16.xpose.msra.mxu0 0
      %1362 = vmatprep.subr.bf16.mxu0 0
      %1363 = vmatpush1.bf16.xpose.msra.mxu0 0
      %1364 = vmatprep.subr.bf16.mxu0 0
      %1365 = vmatpush1.bf16.xpose.msra.mxu0 0
      %1366 = vmatprep.mubr.bf16.mxu0 0
      %1367 = vmatmul.mubr.bf16.gmra.mrb[0].mxu0 %v1228
      %v1368 = vpop.f32.mrb[0].mxu0
      %v1369 = vadd.f32 %v1320, %v1368
      %v1370 = vpop.f32.mrb[0].mxu0
      %v1371 = vpop.f32.mrb[0].mxu0
      %v1372 = vadd.f32 %v1323, %v1371
      %v1373 = vpop.f32.mrb[0].mxu0
      %1374 = vmatprep.mubr.bf16.mxu0 0
      %1375 = vmatmul.mubr.bf16.gmra.mrb[0].mxu0 %v1231
      %v1376 = vpop.f32.mrb[0].mxu0
      %v1377 = vadd.f32 %v1328, %v1376
      %v1378 = vpop.f32.mrb[0].mxu0
      %v1379 = vpop.f32.mrb[0].mxu0
      %v1380 = vadd.f32 %v1331, %v1379
      %v1381 = vpop.f32.mrb[0].mxu0
      %1382 = vdwg.mxu0
      %v1383 = vmax.f32 %v1369, 0.0
      %v1384 = vmax.f32 %v1372, 0.0
      %v1385 = vmax.f32 %v1377, 0.0
      %v1386 = vmax.f32 %v1380, 0.0
      %v1387 = vpack.c.bf16 %v910, %v909
      %v1388 = vpack.c.bf16 %v912, %v911
      %v1389 = vld [vmem:[%s9] sm:$0xff]
      %v1390 = vld [vmem:[%s9 + $0x8] sm:$0xff]
      %v1391 = vld [vmem:[%s9 + $0x10] sm:$0xff]
      %v1392 = vld [vmem:[%s9 + $0x18] sm:$0xff]
      %v1393 = vld [vmem:[%s9 + $0x20] sm:$0xff]
      %v1394 = vld [vmem:[%s9 + $0x28] sm:$0xff]
      %v1395 = vld [vmem:[%s9 + $0x30] sm:$0xff]
      %v1396 = vld [vmem:[%s9 + $0x38] sm:$0xff]
      %v1405 = vunpack.c.l.b16 %v1389
      %v1406 = vunpack.c.h.b16 %v1389
      %v1407 = vunpack.c.l.b16 %v1390
      %v1408 = vunpack.c.h.b16 %v1390
      %v1409 = vunpack.c.l.b16 %v1391
      %v1410 = vunpack.c.h.b16 %v1391
      %v1411 = vunpack.c.l.b16 %v1392
      %v1412 = vunpack.c.h.b16 %v1392
      %v1413 = vunpack.c.l.b16 %v1393
      %v1414 = vunpack.c.h.b16 %v1393
      %v1415 = vunpack.c.l.b16 %v1394
      %v1416 = vunpack.c.h.b16 %v1394
      %v1417 = vunpack.c.l.b16 %v1395
      %v1418 = vunpack.c.h.b16 %v1395
      %v1419 = vunpack.c.l.b16 %v1396
      %v1420 = vunpack.c.h.b16 %v1396
      %v1421 = vpack.c.b16 %v1407, %v1405
      %v1422 = vpack.c.b16 %v1408, %v1406
      %v1423 = vpack.c.b16 %v1411, %v1409
      %v1424 = vpack.c.b16 %v1412, %v1410
      %v1425 = vpack.c.b16 %v1415, %v1413
      %v1426 = vpack.c.b16 %v1416, %v1414
      %v1427 = vpack.c.b16 %v1419, %v1417
      %v1428 = vpack.c.b16 %v1420, %v1418
      %v1438 = vsel %vm1226, %v1387, 0
      %v1441 = vsel %vm1226, %v1388, 0
      %1443 = vmatprep.subr.bf16.mxu0 %v1422
      %1444 = vmatpush1.bf16.msra.mxu0 %v1421
      %1445 = vmatprep.subr.bf16.mxu0 %v1424
      %1446 = vmatpush1.bf16.msra.mxu0 %v1423
      %1447 = vmatprep.subr.bf16.mxu0 %v1426
      %1448 = vmatpush1.bf16.msra.mxu0 %v1425
      %1449 = vmatprep.subr.bf16.mxu0 %v1428
      %1450 = vmatpush1.bf16.msra.mxu0 %v1427
      %1451 = vmatprep.subr.bf16.mxu0 0
      %1452 = vmatpush1.bf16.msra.mxu0 0
      %1453 = vmatprep.subr.bf16.mxu0 0
      %1454 = vmatpush1.bf16.msra.mxu0 0
      %1455 = vmatprep.subr.bf16.mxu0 0
      %1456 = vmatpush1.bf16.msra.mxu0 0
      %1457 = vmatprep.subr.bf16.mxu0 0
      %1458 = vmatpush1.bf16.msra.mxu0 0
      %1459 = vmatprep.subr.bf16.mxu0 0
      %1460 = vmatpush1.bf16.msra.mxu0 0
      %1461 = vmatprep.subr.bf16.mxu0 0
      %1462 = vmatpush1.bf16.msra.mxu0 0
      %1463 = vmatprep.subr.bf16.mxu0 0
      %1464 = vmatpush1.bf16.msra.mxu0 0
      %1465 = vmatprep.subr.bf16.mxu0 0
      %1466 = vmatpush1.bf16.msra.mxu0 0
      %1467 = vmatprep.subr.bf16.mxu0 0
      %1468 = vmatpush1.bf16.msra.mxu0 0
      %1469 = vmatprep.subr.bf16.mxu0 0
      %1470 = vmatpush1.bf16.msra.mxu0 0
      %1471 = vmatprep.subr.bf16.mxu0 0
      %1472 = vmatpush1.bf16.msra.mxu0 0
      %1473 = vmatprep.subr.bf16.mxu0 0
      %1474 = vmatpush1.bf16.msra.mxu0 0
      %1475 = vmatprep.mubr.bf16.mxu0 0
      %1476 = vmatmul.mubr.bf16.gmra.mrb[0].mxu0 %v1438
      %v1477 = vpop.f32.mrb[0].mxu0
      %v1478 = vadd.f32 0.0, %v1477
      %v1479 = vpop.f32.mrb[0].mxu0
      %v1480 = vadd.f32 0.0, %v1479
      %v1481 = vpop.f32.mrb[0].mxu0
      %v1482 = vadd.f32 0.0, %v1481
      %v1483 = vpop.f32.mrb[0].mxu0
      %v1484 = vadd.f32 0.0, %v1483
      %1485 = vmatprep.mubr.bf16.mxu0 0
      %1486 = vmatmul.mubr.bf16.gmra.mrb[0].mxu0 %v1441
      %v1487 = vpop.f32.mrb[0].mxu0
      %v1488 = vadd.f32 0.0, %v1487
      %v1489 = vpop.f32.mrb[0].mxu0
      %v1490 = vadd.f32 0.0, %v1489
      %v1491 = vpop.f32.mrb[0].mxu0
      %v1492 = vadd.f32 0.0, %v1491
      %v1493 = vpop.f32.mrb[0].mxu0
      %v1494 = vadd.f32 0.0, %v1493
      %1495 = vdwg.mxu0
      %v1496 = vpack.c.bf16 %v1104, %v1103
      %v1497 = vpack.c.bf16 %v1106, %v1105
      %v1498 = vld [vmem:[%s10] sm:$0xff]
      %v1499 = vld [vmem:[%s10 + $0x8] sm:$0xff]
      %v1502 = vunpack.c.l.b16 %v1498
      %v1503 = vunpack.c.h.b16 %v1498
      %v1504 = vunpack.c.l.b16 %v1499
      %v1505 = vunpack.c.h.b16 %v1499
      %v1506 = vpack.c.b16 %v1504, %v1502
      %v1507 = vpack.c.b16 %v1505, %v1503
      %v1511 = vsel %vm841, %v1496, 0
      %v1514 = vsel %vm841, %v1497, 0
      %1516 = vmatprep.subr.bf16.mxu0 %v1507
      %1517 = vmatpush1.bf16.msra.mxu0 %v1506
      %1518 = vmatprep.subr.bf16.mxu0 0
      %1519 = vmatpush1.bf16.msra.mxu0 0
      %1520 = vmatprep.subr.bf16.mxu0 0
      %1521 = vmatpush1.bf16.msra.mxu0 0
      %1522 = vmatprep.subr.bf16.mxu0 0
      %1523 = vmatpush1.bf16.msra.mxu0 0
      %1524 = vmatprep.subr.bf16.mxu0 0
      %1525 = vmatpush1.bf16.msra.mxu0 0
      %1526 = vmatprep.subr.bf16.mxu0 0
      %1527 = vmatpush1.bf16.msra.mxu0 0
      %1528 = vmatprep.subr.bf16.mxu0 0
      %1529 = vmatpush1.bf16.msra.mxu0 0
      %1530 = vmatprep.subr.bf16.mxu0 0
      %1531 = vmatpush1.bf16.msra.mxu0 0
      %1532 = vmatprep.subr.bf16.mxu0 0
      %1533 = vmatpush1.bf16.msra.mxu0 0
      %1534 = vmatprep.subr.bf16.mxu0 0
      %1535 = vmatpush1.bf16.msra.mxu0 0
      %1536 = vmatprep.subr.bf16.mxu0 0
      %1537 = vmatpush1.bf16.msra.mxu0 0
      %1538 = vmatprep.subr.bf16.mxu0 0
      %1539 = vmatpush1.bf16.msra.mxu0 0
      %1540 = vmatprep.subr.bf16.mxu0 0
      %1541 = vmatpush1.bf16.msra.mxu0 0
      %1542 = vmatprep.subr.bf16.mxu0 0
      %1543 = vmatpush1.bf16.msra.mxu0 0
      %1544 = vmatprep.subr.bf16.mxu0 0
      %1545 = vmatpush1.bf16.msra.mxu0 0
      %1546 = vmatprep.subr.bf16.mxu0 0
      %1547 = vmatpush1.bf16.msra.mxu0 0
      %1548 = vmatprep.mubr.bf16.mxu0 0
      %1549 = vmatmul.mubr.bf16.gmra.mrb[0].mxu0 %v1511
      %v1550 = vpop.f32.mrb[0].mxu0
      %v1551 = vadd.f32 0.0, %v1550
      %v1552 = vpop.f32.mrb[0].mxu0
      %v1553 = vadd.f32 0.0, %v1552
      %v1554 = vpop.f32.mrb[0].mxu0
      %v1555 = vadd.f32 0.0, %v1554
      %v1556 = vpop.f32.mrb[0].mxu0
      %v1557 = vadd.f32 0.0, %v1556
      %1558 = vmatprep.mubr.bf16.mxu0 0
      %1559 = vmatmul.mubr.bf16.gmra.mrb[0].mxu0 %v1514
      %v1560 = vpop.f32.mrb[0].mxu0
      %v1561 = vadd.f32 0.0, %v1560
      %v1562 = vpop.f32.mrb[0].mxu0
      %v1563 = vadd.f32 0.0, %v1562
      %v1564 = vpop.f32.mrb[0].mxu0
      %v1565 = vadd.f32 0.0, %v1564
      %v1566 = vpop.f32.mrb[0].mxu0
      %v1567 = vadd.f32 0.0, %v1566
      %1568 = vdwg.mxu0
      %v1569 = vpack.c.bf16 %v1384, %v1383
      %v1570 = vpack.c.bf16 %v1386, %v1385
      %v1571 = vld [vmem:[%s11] sm:$0xf]
      %v1574 = vunpack.c.l.s4 1983009808
      %v1575 = vunpack.c.0.s8 %v1574
      %v1576 = vlaneseq
      %v1577 = vshrl.u32 %v1576, 7
      %v1578 = vsub.s32 %v1575, %v1577
      %v1579 = vrot.slane %v1571, %v1578
      %v1580 = vcombine.high %v1579, %v1579
      %vm1581 = vcmask 31744
      %v1583 = vsel %vm1581, %v1569, 0
      %v1586 = vsel %vm1581, %v1570, 0
      %vm1588 = vcmask 1041408
      %v1590 = vsel %vm1588, %v1579, 0
      %v1593 = vsel %vm1588, %v1580, 0
      %1595 = vmatprep.subr.bf16.mxu0 %v1593
      %1596 = vmatpush1.bf16.msra.mxu0 %v1590
      %1597 = vmatprep.subr.bf16.mxu0 0
      %1598 = vmatpush1.bf16.msra.mxu0 0
      %1599 = vmatprep.subr.bf16.mxu0 0
      %1600 = vmatpush1.bf16.msra.mxu0 0
      %1601 = vmatprep.subr.bf16.mxu0 0
      %1602 = vmatpush1.bf16.msra.mxu0 0
      %1603 = vmatprep.subr.bf16.mxu0 0
      %1604 = vmatpush1.bf16.msra.mxu0 0
      %1605 = vmatprep.subr.bf16.mxu0 0
      %1606 = vmatpush1.bf16.msra.mxu0 0
      %1607 = vmatprep.subr.bf16.mxu0 0
      %1608 = vmatpush1.bf16.msra.mxu0 0
      %1609 = vmatprep.subr.bf16.mxu0 0
      %1610 = vmatpush1.bf16.msra.mxu0 0
      %1611 = vmatprep.subr.bf16.mxu0 0
      %1612 = vmatpush1.bf16.msra.mxu0 0
      %1613 = vmatprep.subr.bf16.mxu0 0
      %1614 = vmatpush1.bf16.msra.mxu0 0
      %1615 = vmatprep.subr.bf16.mxu0 0
      %1616 = vmatpush1.bf16.msra.mxu0 0
      %1617 = vmatprep.subr.bf16.mxu0 0
      %1618 = vmatpush1.bf16.msra.mxu0 0
      %1619 = vmatprep.subr.bf16.mxu0 0
      %1620 = vmatpush1.bf16.msra.mxu0 0
      %1621 = vmatprep.subr.bf16.mxu0 0
      %1622 = vmatpush1.bf16.msra.mxu0 0
      %1623 = vmatprep.subr.bf16.mxu0 0
      %1624 = vmatpush1.bf16.msra.mxu0 0
      %1625 = vmatprep.subr.bf16.mxu0 0
      %1626 = vmatpush1.bf16.msra.mxu0 0
      %1627 = vmatprep.mubr.bf16.mxu0 0
      %1628 = vmatmul.mubr.bf16.gmra.mrb[0].mxu0 %v1583
      %v1629 = vpop.f32.mrb[0].mxu0
      %v1630 = vadd.f32 0.0, %v1629
      %v1631 = vpop.f32.mrb[0].mxu0
      %v1632 = vadd.f32 0.0, %v1631
      %v1633 = vpop.f32.mrb[0].mxu0
      %v1634 = vadd.f32 0.0, %v1633
      %v1635 = vpop.f32.mrb[0].mxu0
      %v1636 = vadd.f32 0.0, %v1635
      %1637 = vmatprep.mubr.bf16.mxu0 0
      %1638 = vmatmul.mubr.bf16.gmra.mrb[0].mxu0 %v1586
      %v1639 = vpop.f32.mrb[0].mxu0
      %v1640 = vadd.f32 0.0, %v1639
      %v1641 = vpop.f32.mrb[0].mxu0
      %v1642 = vadd.f32 0.0, %v1641
      %v1643 = vpop.f32.mrb[0].mxu0
      %v1644 = vadd.f32 0.0, %v1643
      %v1645 = vpop.f32.mrb[0].mxu0
      %v1646 = vadd.f32 0.0, %v1645
      %1647 = vdwg.mxu0
      %v1648 = vadd.f32 %v1630, %v1632
      %1649 = vadd.xlane.f32.xlu0 %v1648
      %v1650 = vpop.xlane.xlu0 %1649
      %v1651 = vadd.f32 %v1634, %v1636
      %1652 = vadd.xlane.f32.xlu0 %v1651
      %v1653 = vpop.xlane.xlu0 %1652
      %v1654 = vadd.f32 %v1640, %v1642
      %1655 = vadd.xlane.f32.xlu0 %v1654
      %v1656 = vpop.xlane.xlu0 %1655
      %v1657 = vadd.f32 %v1644, %v1646
      %1658 = vadd.xlane.f32.xlu0 %v1657
      %v1659 = vpop.xlane.xlu0 %1658
      %v1660 = vrcp.pop 256.0
      %v1661 = vmul.f32 %v1650, %v1660
      %v1662 = vmul.f32 %v1653, %v1660
      %v1663 = vmul.f32 %v1656, %v1660
      %v1664 = vmul.f32 %v1659, %v1660
      %v1665 = vadd.f32 %v1551, %v1553
      %1666 = vadd.xlane.f32.xlu0 %v1665
      %v1667 = vpop.xlane.xlu0 %1666
      %v1668 = vadd.f32 %v1555, %v1557
      %1669 = vadd.xlane.f32.xlu0 %v1668
      %v1670 = vpop.xlane.xlu0 %1669
      %v1671 = vadd.f32 %v1561, %v1563
      %1672 = vadd.xlane.f32.xlu0 %v1671
      %v1673 = vpop.xlane.xlu0 %1672
      %v1674 = vadd.f32 %v1565, %v1567
      %1675 = vadd.xlane.f32.xlu0 %v1674
      %v1676 = vpop.xlane.xlu0 %1675
      %v1677 = vmul.f32 %v1667, %v1660
      %v1678 = vmul.f32 %v1670, %v1660
      %v1679 = vmul.f32 %v1673, %v1660
      %v1680 = vmul.f32 %v1676, %v1660
      %v1681 = vadd.f32 %v1478, %v1480
      %1682 = vadd.xlane.f32.xlu0 %v1681
      %v1683 = vpop.xlane.xlu0 %1682
      %v1684 = vadd.f32 %v1482, %v1484
      %1685 = vadd.xlane.f32.xlu0 %v1684
      %v1686 = vpop.xlane.xlu0 %1685
      %v1687 = vadd.f32 %v1488, %v1490
      %1688 = vadd.xlane.f32.xlu0 %v1687
      %v1689 = vpop.xlane.xlu0 %1688
      %v1690 = vadd.f32 %v1492, %v1494
      %1691 = vadd.xlane.f32.xlu0 %v1690
      %v1692 = vpop.xlane.xlu0 %1691
      %v1693 = vmul.f32 %v1683, %v1660
      %v1694 = vmul.f32 %v1686, %v1660
      %v1695 = vmul.f32 %v1689, %v1660
      %v1696 = vmul.f32 %v1692, %v1660
      %v1697 = vadd.f32 %v742, %v743
      %1698 = vadd.xlane.f32.xlu0 %v1697
      %v1699 = vpop.xlane.xlu0 %1698
      %v1700 = vadd.f32 %v744, %v745
      %1701 = vadd.xlane.f32.xlu0 %v1700
      %v1702 = vpop.xlane.xlu0 %1701
      %v1703 = vadd.f32 %v746, %v747
      %1704 = vadd.xlane.f32.xlu0 %v1703
      %v1705 = vpop.xlane.xlu0 %1704
      %v1706 = vadd.f32 %v748, %v749
      %1707 = vadd.xlane.f32.xlu0 %v1706
      %v1708 = vpop.xlane.xlu0 %1707
      %v1709 = vmul.f32 %v1699, %v1660
      %v1710 = vmul.f32 %v1702, %v1660
      %v1711 = vmul.f32 %v1705, %v1660
      %v1712 = vmul.f32 %v1708, %v1660
      %v1713 = vld [vmem:[%s12] sm:$0xf]
      %v1714 = vpack.c.bf16 %v1662, %v1661
      %v1715 = vpack.c.bf16 %v1664, %v1663
      %v1716 = vpack.c.bf16 %v1678, %v1677
      %v1717 = vpack.c.bf16 %v1680, %v1679
      %v1718 = vpack.c.bf16 %v1694, %v1693
      %v1719 = vpack.c.bf16 %v1696, %v1695
      %v1720 = vpack.c.bf16 %v1710, %v1709
      %v1721 = vpack.c.bf16 %v1712, %v1711
      %1722 = vmatprep.subr.bf16.mxu0 0
      %1723 = vmatpush1.bf16.msra.mxu0 %v1714
      %1724 = vmatprep.subr.bf16.mxu0 0
      %1725 = vmatpush1.bf16.msra.mxu0 %v1715
      %1726 = vmatprep.subr.bf16.mxu0 0
      %1727 = vmatpush1.bf16.msra.mxu0 %v1716
      %1728 = vmatprep.subr.bf16.mxu0 0
      %1729 = vmatpush1.bf16.msra.mxu0 %v1717
      %1730 = vmatprep.subr.bf16.mxu0 0
      %1731 = vmatpush1.bf16.msra.mxu0 %v1718
      %1732 = vmatprep.subr.bf16.mxu0 0
      %1733 = vmatpush1.bf16.msra.mxu0 %v1719
      %1734 = vmatprep.subr.bf16.mxu0 0
      %1735 = vmatpush1.bf16.msra.mxu0 %v1720
      %1736 = vmatprep.subr.bf16.mxu0 0
      %1737 = vmatpush1.bf16.msra.mxu0 %v1721
      %1738 = vmatprep.subr.bf16.mxu0 0
      %1739 = vmatpush1.bf16.msra.mxu0 0
      %1740 = vmatprep.subr.bf16.mxu0 0
      %1741 = vmatpush1.bf16.msra.mxu0 0
      %1742 = vmatprep.subr.bf16.mxu0 0
      %1743 = vmatpush1.bf16.msra.mxu0 0
      %1744 = vmatprep.subr.bf16.mxu0 0
      %1745 = vmatpush1.bf16.msra.mxu0 0
      %1746 = vmatprep.subr.bf16.mxu0 0
      %1747 = vmatpush1.bf16.msra.mxu0 0
      %1748 = vmatprep.subr.bf16.mxu0 0
      %1749 = vmatpush1.bf16.msra.mxu0 0
      %1750 = vmatprep.subr.bf16.mxu0 0
      %1751 = vmatpush1.bf16.msra.mxu0 0
      %1752 = vmatprep.subr.bf16.mxu0 0
      %1753 = vmatpush1.bf16.msra.mxu0 0
      %1754 = vmatprep.mubr.bf16.mxu0 0
      %1755 = vmatmul.mubr.bf16.gmra.mrb[0].mxu0 %v1713
      %v1756 = vpop.f32.mrb[0].mxu0
      %v1757 = vadd.f32 0.0, %v1756
      %v1758 = vpop.f32.mrb[0].mxu0
      %v1759 = vpop.f32.mrb[0].mxu0
      %v1760 = vpop.f32.mrb[0].mxu0
      %1761 = vdwg.mxu0
      %v1762 = vmax.f32 %v1757, 0.0
      %v1763 = vld [vmem:[%s13] sm:$0xf]
      %v1764 = vld [vmem:[%s13 + $0x4] sm:$0xf]
      %v1765 = vld [vmem:[%s13 + $0x8] sm:$0xf]
      %v1766 = vld [vmem:[%s13 + $0xc] sm:$0xf]
      %v1767 = vld [vmem:[%s13 + $0x10] sm:$0xf]
      %v1768 = vld [vmem:[%s13 + $0x14] sm:$0xf]
      %v1769 = vld [vmem:[%s13 + $0x18] sm:$0xf]
      %v1770 = vld [vmem:[%s13 + $0x1c] sm:$0xf]
      %v1771 = vld [vmem:[%s13 + $0x20] sm:$0xf]
      %v1772 = vld [vmem:[%s13 + $0x24] sm:$0xf]
      %v1773 = vld [vmem:[%s13 + $0x28] sm:$0xf]
      %v1774 = vld [vmem:[%s13 + $0x2c] sm:$0xf]
      %v1775 = vld [vmem:[%s13 + $0x30] sm:$0xf]
      %v1776 = vld [vmem:[%s13 + $0x34] sm:$0xf]
      %v1777 = vld [vmem:[%s13 + $0x38] sm:$0xf]
      %v1778 = vld [vmem:[%s13 + $0x3c] sm:$0xf]
      %v1779 = vpack.c.bf16 %v1762, %v1762
      %v1796 = vunpack.c.l.b16 %v1763
      %v1797 = vunpack.c.l.b16 %v1764
      %v1798 = vunpack.c.l.b16 %v1765
      %v1799 = vunpack.c.l.b16 %v1766
      %v1800 = vunpack.c.l.b16 %v1767
      %v1801 = vunpack.c.l.b16 %v1768
      %v1802 = vunpack.c.l.b16 %v1769
      %v1803 = vunpack.c.l.b16 %v1770
      %v1804 = vunpack.c.l.b16 %v1771
      %v1805 = vunpack.c.l.b16 %v1772
      %v1806 = vunpack.c.l.b16 %v1773
      %v1807 = vunpack.c.l.b16 %v1774
      %v1808 = vunpack.c.l.b16 %v1775
      %v1809 = vunpack.c.l.b16 %v1776
      %v1810 = vunpack.c.l.b16 %v1777
      %v1811 = vunpack.c.l.b16 %v1778
      %v1812 = vpack.c.b16 %v1797, %v1796
      %v1813 = vpack.c.b16 %v1799, %v1798
      %v1814 = vpack.c.b16 %v1801, %v1800
      %v1815 = vpack.c.b16 %v1803, %v1802
      %v1816 = vpack.c.b16 %v1805, %v1804
      %v1817 = vpack.c.b16 %v1807, %v1806
      %v1818 = vpack.c.b16 %v1809, %v1808
      %v1819 = vpack.c.b16 %v1811, %v1810
      %vm1820 = vcmask 64512
      %v1822 = vsel %vm1820, %v1812, 0
      %v1825 = vsel %vm1820, %v1813, 0
      %v1828 = vsel %vm1820, %v1814, 0
      %v1831 = vsel %vm1820, %v1815, 0
      %v1834 = vsel %vm1820, %v1816, 0
      %v1837 = vsel %vm1820, %v1817, 0
      %v1840 = vsel %vm1820, %v1818, 0
      %v1843 = vsel %vm1820, %v1819, 0
      %v1846 = vsel %vm682, %v1779, 0
      %1848 = vmatprep.subr.bf16.mxu0 0
      %1849 = vmatpush1.bf16.msra.mxu0 %v1846
      %1850 = vmatprep.subr.bf16.mxu0 0
      %1851 = vmatpush1.bf16.msra.mxu0 0
      %1852 = vmatprep.subr.bf16.mxu0 0
      %1853 = vmatpush1.bf16.msra.mxu0 0
      %1854 = vmatprep.subr.bf16.mxu0 0
      %1855 = vmatpush1.bf16.msra.mxu0 0
      %1856 = vmatprep.subr.bf16.mxu0 0
      %1857 = vmatpush1.bf16.msra.mxu0 0
      %1858 = vmatprep.subr.bf16.mxu0 0
      %1859 = vmatpush1.bf16.msra.mxu0 0
      %1860 = vmatprep.subr.bf16.mxu0 0
      %1861 = vmatpush1.bf16.msra.mxu0 0
      %1862 = vmatprep.subr.bf16.mxu0 0
      %1863 = vmatpush1.bf16.msra.mxu0 0
      %1864 = vmatprep.subr.bf16.mxu0 0
      %1865 = vmatpush1.bf16.msra.mxu0 0
      %1866 = vmatprep.subr.bf16.mxu0 0
      %1867 = vmatpush1.bf16.msra.mxu0 0
      %1868 = vmatprep.subr.bf16.mxu0 0
      %1869 = vmatpush1.bf16.msra.mxu0 0
      %1870 = vmatprep.subr.bf16.mxu0 0
      %1871 = vmatpush1.bf16.msra.mxu0 0
      %1872 = vmatprep.subr.bf16.mxu0 0
      %1873 = vmatpush1.bf16.msra.mxu0 0
      %1874 = vmatprep.subr.bf16.mxu0 0
      %1875 = vmatpush1.bf16.msra.mxu0 0
      %1876 = vmatprep.subr.bf16.mxu0 0
      %1877 = vmatpush1.bf16.msra.mxu0 0
      %1878 = vmatprep.subr.bf16.mxu0 0
      %1879 = vmatpush1.bf16.msra.mxu0 0
      %1880 = vmatprep.mubr.bf16.mxu0 0
      %1881 = vmatmul.mubr.bf16.gmra.mrb[0].mxu0 %v1822
      %v1882 = vpop.f32.mrb[0].mxu0
      %v1883 = vadd.f32 0.0, %v1882
      %v1884 = vpop.f32.mrb[0].mxu0
      %v1885 = vpop.f32.mrb[0].mxu0
      %v1886 = vadd.f32 0.0, %v1885
      %v1887 = vpop.f32.mrb[0].mxu0
      %1888 = vmatprep.mubr.bf16.mxu0 0
      %1889 = vmatmul.mubr.bf16.gmra.mrb[0].mxu0 %v1825
      %v1890 = vpop.f32.mrb[0].mxu0
      %v1891 = vadd.f32 0.0, %v1890
      %v1892 = vpop.f32.mrb[0].mxu0
      %v1893 = vpop.f32.mrb[0].mxu0
      %v1894 = vadd.f32 0.0, %v1893
      %v1895 = vpop.f32.mrb[0].mxu0
      %1896 = vmatprep.mubr.bf16.mxu0 0
      %1897 = vmatmul.mubr.bf16.gmra.mrb[0].mxu0 %v1828
      %v1898 = vpop.f32.mrb[0].mxu0
      %v1899 = vadd.f32 0.0, %v1898
      %v1900 = vpop.f32.mrb[0].mxu0
      %v1901 = vpop.f32.mrb[0].mxu0
      %v1902 = vadd.f32 0.0, %v1901
      %v1903 = vpop.f32.mrb[0].mxu0
      %1904 = vmatprep.mubr.bf16.mxu0 0
      %1905 = vmatmul.mubr.bf16.gmra.mrb[0].mxu0 %v1831
      %v1906 = vpop.f32.mrb[0].mxu0
      %v1907 = vadd.f32 0.0, %v1906
      %v1908 = vpop.f32.mrb[0].mxu0
      %v1909 = vpop.f32.mrb[0].mxu0
      %v1910 = vadd.f32 0.0, %v1909
      %v1911 = vpop.f32.mrb[0].mxu0
      %1912 = vmatprep.mubr.bf16.mxu0 0
      %1913 = vmatmul.mubr.bf16.gmra.mrb[0].mxu0 %v1834
      %v1914 = vpop.f32.mrb[0].mxu0
      %v1915 = vadd.f32 0.0, %v1914
      %v1916 = vpop.f32.mrb[0].mxu0
      %v1917 = vpop.f32.mrb[0].mxu0
      %v1918 = vadd.f32 0.0, %v1917
      %v1919 = vpop.f32.mrb[0].mxu0
      %1920 = vmatprep.mubr.bf16.mxu0 0
      %1921 = vmatmul.mubr.bf16.gmra.mrb[0].mxu0 %v1837
      %v1922 = vpop.f32.mrb[0].mxu0
      %v1923 = vadd.f32 0.0, %v1922
      %v1924 = vpop.f32.mrb[0].mxu0
      %v1925 = vpop.f32.mrb[0].mxu0
      %v1926 = vadd.f32 0.0, %v1925
      %v1927 = vpop.f32.mrb[0].mxu0
      %1928 = vmatprep.mubr.bf16.mxu0 0
      %1929 = vmatmul.mubr.bf16.gmra.mrb[0].mxu0 %v1840
      %v1930 = vpop.f32.mrb[0].mxu0
      %v1931 = vadd.f32 0.0, %v1930
      %v1932 = vpop.f32.mrb[0].mxu0
      %v1933 = vpop.f32.mrb[0].mxu0
      %v1934 = vadd.f32 0.0, %v1933
      %v1935 = vpop.f32.mrb[0].mxu0
      %1936 = vmatprep.mubr.bf16.mxu0 0
      %1937 = vmatmul.mubr.bf16.gmra.mrb[0].mxu0 %v1843
      %v1938 = vpop.f32.mrb[0].mxu0
      %v1939 = vadd.f32 0.0, %v1938
      %v1940 = vpop.f32.mrb[0].mxu0
      %v1941 = vpop.f32.mrb[0].mxu0
      %v1942 = vadd.f32 0.0, %v1941
      %v1943 = vpop.f32.mrb[0].mxu0
      %1944 = vdwg.mxu0
      %v1945 = vxor.u32 %v1883, 2147483648
      %v1946 = vxor.u32 %v1886, 2147483648
      %v1947 = vxor.u32 %v1891, 2147483648
      %v1948 = vxor.u32 %v1894, 2147483648
      %v1949 = vxor.u32 %v1899, 2147483648
      %v1950 = vxor.u32 %v1902, 2147483648
      %v1951 = vxor.u32 %v1907, 2147483648
      %v1952 = vxor.u32 %v1910, 2147483648
      %v1953 = vxor.u32 %v1915, 2147483648
      %v1954 = vxor.u32 %v1918, 2147483648
      %v1955 = vxor.u32 %v1923, 2147483648
      %v1956 = vxor.u32 %v1926, 2147483648
      %v1957 = vxor.u32 %v1931, 2147483648
      %v1958 = vxor.u32 %v1934, 2147483648
      %v1959 = vxor.u32 %v1939, 2147483648
      %v1960 = vxor.u32 %v1942, 2147483648
      %v1961 = vmul.f32 %v1945, 1.442695
      %v1962 = vpow.pop %v1961
      %v1963 = vmul.f32 %v1946, 1.442695
      %v1964 = vpow.pop %v1963
      %v1965 = vmul.f32 %v1947, 1.442695
      %v1966 = vpow.pop %v1965
      %v1967 = vmul.f32 %v1948, 1.442695
      %v1968 = vpow.pop %v1967
      %v1969 = vmul.f32 %v1949, 1.442695
      %v1970 = vpow.pop %v1969
      %v1971 = vmul.f32 %v1950, 1.442695
      %v1972 = vpow.pop %v1971
      %v1973 = vmul.f32 %v1951, 1.442695
      %v1974 = vpow.pop %v1973
      %v1975 = vmul.f32 %v1952, 1.442695
      %v1976 = vpow.pop %v1975
      %v1977 = vmul.f32 %v1953, 1.442695
      %v1978 = vpow.pop %v1977
      %v1979 = vmul.f32 %v1954, 1.442695
      %v1980 = vpow.pop %v1979
      %v1981 = vmul.f32 %v1955, 1.442695
      %v1982 = vpow.pop %v1981
      %v1983 = vmul.f32 %v1956, 1.442695
      %v1984 = vpow.pop %v1983
      %v1985 = vmul.f32 %v1957, 1.442695
      %v1986 = vpow.pop %v1985
      %v1987 = vmul.f32 %v1958, 1.442695
      %v1988 = vpow.pop %v1987
      %v1989 = vmul.f32 %v1959, 1.442695
      %v1990 = vpow.pop %v1989
      %v1991 = vmul.f32 %v1960, 1.442695
      %v1992 = vpow.pop %v1991
      %v1993 = vadd.f32 %v1962, 1.0
      %v1994 = vadd.f32 %v1964, 1.0
      %v1995 = vadd.f32 %v1966, 1.0
      %v1996 = vadd.f32 %v1968, 1.0
      %v1997 = vadd.f32 %v1970, 1.0
      %v1998 = vadd.f32 %v1972, 1.0
      %v1999 = vadd.f32 %v1974, 1.0
      %v2000 = vadd.f32 %v1976, 1.0
      %v2001 = vadd.f32 %v1978, 1.0
      %v2002 = vadd.f32 %v1980, 1.0
      %v2003 = vadd.f32 %v1982, 1.0
      %v2004 = vadd.f32 %v1984, 1.0
      %v2005 = vadd.f32 %v1986, 1.0
      %v2006 = vadd.f32 %v1988, 1.0
      %v2007 = vadd.f32 %v1990, 1.0
      %v2008 = vadd.f32 %v1992, 1.0
      %v2009 = vrcp.pop %v1993
      %v2010 = vmul.f32 1.0, %v2009
      %v2011 = vrcp.pop %v1994
      %v2012 = vmul.f32 1.0, %v2011
      %v2013 = vrcp.pop %v1995
      %v2014 = vmul.f32 1.0, %v2013
      %v2015 = vrcp.pop %v1996
      %v2016 = vmul.f32 1.0, %v2015
      %v2017 = vrcp.pop %v1997
      %v2018 = vmul.f32 1.0, %v2017
      %v2019 = vrcp.pop %v1998
      %v2020 = vmul.f32 1.0, %v2019
      %v2021 = vrcp.pop %v1999
      %v2022 = vmul.f32 1.0, %v2021
      %v2023 = vrcp.pop %v2000
      %v2024 = vmul.f32 1.0, %v2023
      %v2025 = vrcp.pop %v2001
      %v2026 = vmul.f32 1.0, %v2025
      %v2027 = vrcp.pop %v2002
      %v2028 = vmul.f32 1.0, %v2027
      %v2029 = vrcp.pop %v2003
      %v2030 = vmul.f32 1.0, %v2029
      %v2031 = vrcp.pop %v2004
      %v2032 = vmul.f32 1.0, %v2031
      %v2033 = vrcp.pop %v2005
      %v2034 = vmul.f32 1.0, %v2033
      %v2035 = vrcp.pop %v2006
      %v2036 = vmul.f32 1.0, %v2035
      %v2037 = vrcp.pop %v2007
      %v2038 = vmul.f32 1.0, %v2037
      %v2039 = vrcp.pop %v2008
      %v2040 = vmul.f32 1.0, %v2039
      %2042 = vset.pattern.permute.xlu0 0
      %2043 = vperm.xlu0 %2042, %v2010
      %v2044 = vpop.permute.xlu0 %2043
      %2047 = vset.pattern.permute.xlu0 0
      %2048 = vperm.xlu0 %2047, %v2012
      %v2049 = vpop.permute.xlu0 %2048
      %2052 = vset.pattern.permute.xlu0 0
      %2053 = vperm.xlu0 %2052, %v2014
      %v2054 = vpop.permute.xlu0 %2053
      %2057 = vset.pattern.permute.xlu0 0
      %2058 = vperm.xlu0 %2057, %v2016
      %v2059 = vpop.permute.xlu0 %2058
      %v2061 = vmul.f32 %v1630, %v2044
      %v2062 = vmul.f32 %v1632, %v2044
      %v2063 = vmul.f32 %v1634, %v2049
      %v2064 = vmul.f32 %v1636, %v2049
      %v2065 = vmul.f32 %v1640, %v2054
      %v2066 = vmul.f32 %v1642, %v2054
      %v2067 = vmul.f32 %v1644, %v2059
      %v2068 = vmul.f32 %v1646, %v2059
      %v2069 = vpack.c.bf16 %v2063, %v2061
      %v2070 = vpack.c.bf16 %v2064, %v2062
      %v2071 = vpack.c.bf16 %v2067, %v2065
      %v2072 = vpack.c.bf16 %v2068, %v2066
      %v2073 = vld [vmem:[%s14] sm:$0xf]
      %v2074 = vld [vmem:[%s14 + $0x4] sm:$0xf]
      %v2075 = vld [vmem:[%s14 + $0x8] sm:$0xf]
      %v2076 = vld [vmem:[%s14 + $0xc] sm:$0xf]
      %2078 = vset.pattern.permute.xlu0 0
      %2079 = vperm.xlu0 %2078, %v2018
      %v2080 = vpop.permute.xlu0 %2079
      %2083 = vset.pattern.permute.xlu0 0
      %2084 = vperm.xlu0 %2083, %v2020
      %v2085 = vpop.permute.xlu0 %2084
      %2088 = vset.pattern.permute.xlu0 0
      %2089 = vperm.xlu0 %2088, %v2022
      %v2090 = vpop.permute.xlu0 %2089
      %2093 = vset.pattern.permute.xlu0 0
      %2094 = vperm.xlu0 %2093, %v2024
      %v2095 = vpop.permute.xlu0 %2094
      %v2097 = vmul.f32 %v1551, %v2080
      %v2098 = vmul.f32 %v1553, %v2080
      %v2099 = vmul.f32 %v1555, %v2085
      %v2100 = vmul.f32 %v1557, %v2085
      %v2101 = vmul.f32 %v1561, %v2090
      %v2102 = vmul.f32 %v1563, %v2090
      %v2103 = vmul.f32 %v1565, %v2095
      %v2104 = vmul.f32 %v1567, %v2095
      %v2105 = vpack.c.bf16 %v2099, %v2097
      %v2106 = vpack.c.bf16 %v2100, %v2098
      %v2107 = vpack.c.bf16 %v2103, %v2101
      %v2108 = vpack.c.bf16 %v2104, %v2102
      %s2109 = scalar_lea.vmem %s14, 16
      %v2110 = vld [vmem:[%s2109] sm:$0xf]
      %v2111 = vld [vmem:[%s2109 + $0x4] sm:$0xf]
      %v2112 = vld [vmem:[%s2109 + $0x8] sm:$0xf]
      %v2113 = vld [vmem:[%s2109 + $0xc] sm:$0xf]
      %v2118 = vunpack.c.l.b16 %v2110
      %v2119 = vunpack.c.l.b16 %v2111
      %v2120 = vunpack.c.l.b16 %v2112
      %v2121 = vunpack.c.l.b16 %v2113
      %v2122 = vpack.c.b16 %v2119, %v2118
      %v2123 = vpack.c.b16 %v2121, %v2120
      %v2125 = vsel %vm995, %v2122, 0
      %v2128 = vsel %vm995, %v2123, 0
      %2130 = vmatprep.subr.bf16.mxu0 %v2106
      %2131 = vmatpush1.bf16.msra.mxu0 %v2105
      %2132 = vmatprep.subr.bf16.mxu0 %v2108
      %2133 = vmatpush1.bf16.msra.mxu0 %v2107
      %2134 = vmatprep.subr.bf16.mxu0 0
      %2135 = vmatpush1.bf16.msra.mxu0 0
      %2136 = vmatprep.subr.bf16.mxu0 0
      %2137 = vmatpush1.bf16.msra.mxu0 0
      %2138 = vmatprep.subr.bf16.mxu0 0
      %2139 = vmatpush1.bf16.msra.mxu0 0
      %2140 = vmatprep.subr.bf16.mxu0 0
      %2141 = vmatpush1.bf16.msra.mxu0 0
      %2142 = vmatprep.subr.bf16.mxu0 0
      %2143 = vmatpush1.bf16.msra.mxu0 0
      %2144 = vmatprep.subr.bf16.mxu0 0
      %2145 = vmatpush1.bf16.msra.mxu0 0
      %2146 = vmatprep.subr.bf16.mxu0 0
      %2147 = vmatpush1.bf16.msra.mxu0 0
      %2148 = vmatprep.subr.bf16.mxu0 0
      %2149 = vmatpush1.bf16.msra.mxu0 0
      %2150 = vmatprep.subr.bf16.mxu0 0
      %2151 = vmatpush1.bf16.msra.mxu0 0
      %2152 = vmatprep.subr.bf16.mxu0 0
      %2153 = vmatpush1.bf16.msra.mxu0 0
      %2154 = vmatprep.subr.bf16.mxu0 0
      %2155 = vmatpush1.bf16.msra.mxu0 0
      %2156 = vmatprep.subr.bf16.mxu0 0
      %2157 = vmatpush1.bf16.msra.mxu0 0
      %2158 = vmatprep.subr.bf16.mxu0 0
      %2159 = vmatpush1.bf16.msra.mxu0 0
      %2160 = vmatprep.subr.bf16.mxu0 0
      %2161 = vmatpush1.bf16.msra.mxu0 0
      %2162 = vmatprep.mubr.bf16.mxu0 0
      %2163 = vmatmul.mubr.bf16.gmra.mrb[0].mxu0 %v2125
      %v2164 = vpop.f32.mrb[0].mxu0
      %v2165 = vadd.f32 0.0, %v2164
      %v2166 = vpop.f32.mrb[0].mxu0
      %v2167 = vadd.f32 0.0, %v2166
      %v2168 = vpop.f32.mrb[0].mxu0
      %v2169 = vadd.f32 0.0, %v2168
      %v2170 = vpop.f32.mrb[0].mxu0
      %v2171 = vadd.f32 0.0, %v2170
      %2172 = vmatprep.mubr.bf16.mxu0 0
      %2173 = vmatmul.mubr.bf16.gmra.mrb[0].mxu0 %v2128
      %v2174 = vpop.f32.mrb[0].mxu0
      %v2175 = vadd.f32 0.0, %v2174
      %v2176 = vpop.f32.mrb[0].mxu0
      %v2177 = vadd.f32 0.0, %v2176
      %v2178 = vpop.f32.mrb[0].mxu0
      %v2179 = vadd.f32 0.0, %v2178
      %v2180 = vpop.f32.mrb[0].mxu0
      %v2181 = vadd.f32 0.0, %v2180
      %2182 = vdwg.mxu0
      %v2187 = vunpack.c.l.b16 %v2073
      %v2188 = vunpack.c.l.b16 %v2074
      %v2189 = vunpack.c.l.b16 %v2075
      %v2190 = vunpack.c.l.b16 %v2076
      %v2191 = vpack.c.b16 %v2188, %v2187
      %v2192 = vpack.c.b16 %v2190, %v2189
      %v2194 = vsel %vm995, %v2191, 0
      %v2197 = vsel %vm995, %v2192, 0
      %2199 = vmatprep.subr.bf16.mxu0 %v2070
      %2200 = vmatpush1.bf16.msra.mxu0 %v2069
      %2201 = vmatprep.subr.bf16.mxu0 %v2072
      %2202 = vmatpush1.bf16.msra.mxu0 %v2071
      %2203 = vmatprep.subr.bf16.mxu0 0
      %2204 = vmatpush1.bf16.msra.mxu0 0
      %2205 = vmatprep.subr.bf16.mxu0 0
      %2206 = vmatpush1.bf16.msra.mxu0 0
      %2207 = vmatprep.subr.bf16.mxu0 0
      %2208 = vmatpush1.bf16.msra.mxu0 0
      %2209 = vmatprep.subr.bf16.mxu0 0
      %2210 = vmatpush1.bf16.msra.mxu0 0
      %2211 = vmatprep.subr.bf16.mxu0 0
      %2212 = vmatpush1.bf16.msra.mxu0 0
      %2213 = vmatprep.subr.bf16.mxu0 0
      %2214 = vmatpush1.bf16.msra.mxu0 0
      %2215 = vmatprep.subr.bf16.mxu0 0
      %2216 = vmatpush1.bf16.msra.mxu0 0
      %2217 = vmatprep.subr.bf16.mxu0 0
      %2218 = vmatpush1.bf16.msra.mxu0 0
      %2219 = vmatprep.subr.bf16.mxu0 0
      %2220 = vmatpush1.bf16.msra.mxu0 0
      %2221 = vmatprep.subr.bf16.mxu0 0
      %2222 = vmatpush1.bf16.msra.mxu0 0
      %2223 = vmatprep.subr.bf16.mxu0 0
      %2224 = vmatpush1.bf16.msra.mxu0 0
      %2225 = vmatprep.subr.bf16.mxu0 0
      %2226 = vmatpush1.bf16.msra.mxu0 0
      %2227 = vmatprep.subr.bf16.mxu0 0
      %2228 = vmatpush1.bf16.msra.mxu0 0
      %2229 = vmatprep.subr.bf16.mxu0 0
      %2230 = vmatpush1.bf16.msra.mxu0 0
      %2231 = vmatprep.mubr.bf16.mxu0 0
      %2232 = vmatmul.mubr.bf16.gmra.mrb[0].mxu0 %v2194
      %v2233 = vpop.f32.mrb[0].mxu0
      %v2234 = vadd.f32 %v2165, %v2233
      %v2235 = vpop.f32.mrb[0].mxu0
      %v2236 = vadd.f32 %v2167, %v2235
      %v2237 = vpop.f32.mrb[0].mxu0
      %v2238 = vadd.f32 %v2169, %v2237
      %v2239 = vpop.f32.mrb[0].mxu0
      %v2240 = vadd.f32 %v2171, %v2239
      %2241 = vmatprep.mubr.bf16.mxu0 0
      %2242 = vmatmul.mubr.bf16.gmra.mrb[0].mxu0 %v2197
      %v2243 = vpop.f32.mrb[0].mxu0
      %v2244 = vadd.f32 %v2175, %v2243
      %v2245 = vpop.f32.mrb[0].mxu0
      %v2246 = vadd.f32 %v2177, %v2245
      %v2247 = vpop.f32.mrb[0].mxu0
      %v2248 = vadd.f32 %v2179, %v2247
      %v2249 = vpop.f32.mrb[0].mxu0
      %v2250 = vadd.f32 %v2181, %v2249
      %2251 = vdwg.mxu0
      %2253 = vset.pattern.permute.xlu0 0
      %2254 = vperm.xlu0 %2253, %v2026
      %v2255 = vpop.permute.xlu0 %2254
      %2258 = vset.pattern.permute.xlu0 0
      %2259 = vperm.xlu0 %2258, %v2028
      %v2260 = vpop.permute.xlu0 %2259
      %2263 = vset.pattern.permute.xlu0 0
      %2264 = vperm.xlu0 %2263, %v2030
      %v2265 = vpop.permute.xlu0 %2264
      %2268 = vset.pattern.permute.xlu0 0
      %2269 = vperm.xlu0 %2268, %v2032
      %v2270 = vpop.permute.xlu0 %2269
      %v2272 = vmul.f32 %v1478, %v2255
      %v2273 = vmul.f32 %v1480, %v2255
      %v2274 = vmul.f32 %v1482, %v2260
      %v2275 = vmul.f32 %v1484, %v2260
      %v2276 = vmul.f32 %v1488, %v2265
      %v2277 = vmul.f32 %v1490, %v2265
      %v2278 = vmul.f32 %v1492, %v2270
      %v2279 = vmul.f32 %v1494, %v2270
      %v2280 = vpack.c.bf16 %v2274, %v2272
      %v2281 = vpack.c.bf16 %v2275, %v2273
      %v2282 = vpack.c.bf16 %v2278, %v2276
      %v2283 = vpack.c.bf16 %v2279, %v2277
      %s2284 = scalar_lea.vmem %s14, 32
      %v2285 = vld [vmem:[%s2284] sm:$0xf]
      %v2286 = vld [vmem:[%s2284 + $0x4] sm:$0xf]
      %v2287 = vld [vmem:[%s2284 + $0x8] sm:$0xf]
      %v2288 = vld [vmem:[%s2284 + $0xc] sm:$0xf]
      %v2293 = vunpack.c.l.b16 %v2285
      %v2294 = vunpack.c.l.b16 %v2286
      %v2295 = vunpack.c.l.b16 %v2287
      %v2296 = vunpack.c.l.b16 %v2288
      %v2297 = vpack.c.b16 %v2294, %v2293
      %v2298 = vpack.c.b16 %v2296, %v2295
      %v2300 = vsel %vm995, %v2297, 0
      %v2303 = vsel %vm995, %v2298, 0
      %2305 = vmatprep.subr.bf16.mxu0 %v2281
      %2306 = vmatpush1.bf16.msra.mxu0 %v2280
      %2307 = vmatprep.subr.bf16.mxu0 %v2283
      %2308 = vmatpush1.bf16.msra.mxu0 %v2282
      %2309 = vmatprep.subr.bf16.mxu0 0
      %2310 = vmatpush1.bf16.msra.mxu0 0
      %2311 = vmatprep.subr.bf16.mxu0 0
      %2312 = vmatpush1.bf16.msra.mxu0 0
      %2313 = vmatprep.subr.bf16.mxu0 0
      %2314 = vmatpush1.bf16.msra.mxu0 0
      %2315 = vmatprep.subr.bf16.mxu0 0
      %2316 = vmatpush1.bf16.msra.mxu0 0
      %2317 = vmatprep.subr.bf16.mxu0 0
      %2318 = vmatpush1.bf16.msra.mxu0 0
      %2319 = vmatprep.subr.bf16.mxu0 0
      %2320 = vmatpush1.bf16.msra.mxu0 0
      %2321 = vmatprep.subr.bf16.mxu0 0
      %2322 = vmatpush1.bf16.msra.mxu0 0
      %2323 = vmatprep.subr.bf16.mxu0 0
      %2324 = vmatpush1.bf16.msra.mxu0 0
      %2325 = vmatprep.subr.bf16.mxu0 0
      %2326 = vmatpush1.bf16.msra.mxu0 0
      %2327 = vmatprep.subr.bf16.mxu0 0
      %2328 = vmatpush1.bf16.msra.mxu0 0
      %2329 = vmatprep.subr.bf16.mxu0 0
      %2330 = vmatpush1.bf16.msra.mxu0 0
      %2331 = vmatprep.subr.bf16.mxu0 0
      %2332 = vmatpush1.bf16.msra.mxu0 0
      %2333 = vmatprep.subr.bf16.mxu0 0
      %2334 = vmatpush1.bf16.msra.mxu0 0
      %2335 = vmatprep.subr.bf16.mxu0 0
      %2336 = vmatpush1.bf16.msra.mxu0 0
      %2337 = vmatprep.mubr.bf16.mxu0 0
      %2338 = vmatmul.mubr.bf16.gmra.mrb[0].mxu0 %v2300
      %v2339 = vpop.f32.mrb[0].mxu0
      %v2340 = vadd.f32 0.0, %v2339
      %v2341 = vpop.f32.mrb[0].mxu0
      %v2342 = vadd.f32 0.0, %v2341
      %v2343 = vpop.f32.mrb[0].mxu0
      %v2344 = vadd.f32 0.0, %v2343
      %v2345 = vpop.f32.mrb[0].mxu0
      %v2346 = vadd.f32 0.0, %v2345
      %2347 = vmatprep.mubr.bf16.mxu0 0
      %2348 = vmatmul.mubr.bf16.gmra.mrb[0].mxu0 %v2303
      %v2349 = vpop.f32.mrb[0].mxu0
      %v2350 = vadd.f32 0.0, %v2349
      %v2351 = vpop.f32.mrb[0].mxu0
      %v2352 = vadd.f32 0.0, %v2351
      %v2353 = vpop.f32.mrb[0].mxu0
      %v2354 = vadd.f32 0.0, %v2353
      %v2355 = vpop.f32.mrb[0].mxu0
      %v2356 = vadd.f32 0.0, %v2355
      %2357 = vdwg.mxu0
      %v2358 = vadd.f32 %v2234, %v2340
      %v2359 = vadd.f32 %v2236, %v2342
      %v2360 = vadd.f32 %v2238, %v2344
      %v2361 = vadd.f32 %v2240, %v2346
      %v2362 = vadd.f32 %v2244, %v2350
      %v2363 = vadd.f32 %v2246, %v2352
      %v2364 = vadd.f32 %v2248, %v2354
      %v2365 = vadd.f32 %v2250, %v2356
      %2367 = vset.pattern.permute.xlu0 0
      %2368 = vperm.xlu0 %2367, %v2034
      %v2369 = vpop.permute.xlu0 %2368
      %2372 = vset.pattern.permute.xlu0 0
      %2373 = vperm.xlu0 %2372, %v2036
      %v2374 = vpop.permute.xlu0 %2373
      %2377 = vset.pattern.permute.xlu0 0
      %2378 = vperm.xlu0 %2377, %v2038
      %v2379 = vpop.permute.xlu0 %2378
      %2382 = vset.pattern.permute.xlu0 0
      %2383 = vperm.xlu0 %2382, %v2040
      %v2384 = vpop.permute.xlu0 %2383
      %v2386 = vmul.f32 %v742, %v2369
      %v2387 = vmul.f32 %v743, %v2369
      %v2388 = vmul.f32 %v744, %v2374
      %v2389 = vmul.f32 %v745, %v2374
      %v2390 = vmul.f32 %v746, %v2379
      %v2391 = vmul.f32 %v747, %v2379
      %v2392 = vmul.f32 %v748, %v2384
      %v2393 = vmul.f32 %v749, %v2384
      %v2394 = vpack.c.bf16 %v2388, %v2386
      %v2395 = vpack.c.bf16 %v2389, %v2387
      %v2396 = vpack.c.bf16 %v2392, %v2390
      %v2397 = vpack.c.bf16 %v2393, %v2391
      %s2398 = scalar_lea.vmem %s14, 48
      %v2399 = vld [vmem:[%s2398] sm:$0xf]
      %v2400 = vld [vmem:[%s2398 + $0x4] sm:$0xf]
      %v2401 = vld [vmem:[%s2398 + $0x8] sm:$0xf]
      %v2402 = vld [vmem:[%s2398 + $0xc] sm:$0xf]
      %v2407 = vunpack.c.l.b16 %v2399
      %v2408 = vunpack.c.l.b16 %v2400
      %v2409 = vunpack.c.l.b16 %v2401
      %v2410 = vunpack.c.l.b16 %v2402
      %v2411 = vpack.c.b16 %v2408, %v2407
      %v2412 = vpack.c.b16 %v2410, %v2409
      %v2414 = vsel %vm995, %v2411, 0
      %v2417 = vsel %vm995, %v2412, 0
      %2419 = vmatprep.subr.bf16.mxu0 %v2395
      %2420 = vmatpush1.bf16.msra.mxu0 %v2394
      %2421 = vmatprep.subr.bf16.mxu0 %v2397
      %2422 = vmatpush1.bf16.msra.mxu0 %v2396
      %2423 = vmatprep.subr.bf16.mxu0 0
      %2424 = vmatpush1.bf16.msra.mxu0 0
      %2425 = vmatprep.subr.bf16.mxu0 0
      %2426 = vmatpush1.bf16.msra.mxu0 0
      %2427 = vmatprep.subr.bf16.mxu0 0
      %2428 = vmatpush1.bf16.msra.mxu0 0
      %2429 = vmatprep.subr.bf16.mxu0 0
      %2430 = vmatpush1.bf16.msra.mxu0 0
      %2431 = vmatprep.subr.bf16.mxu0 0
      %2432 = vmatpush1.bf16.msra.mxu0 0
      %2433 = vmatprep.subr.bf16.mxu0 0
      %2434 = vmatpush1.bf16.msra.mxu0 0
      %2435 = vmatprep.subr.bf16.mxu0 0
      %2436 = vmatpush1.bf16.msra.mxu0 0
      %2437 = vmatprep.subr.bf16.mxu0 0
      %2438 = vmatpush1.bf16.msra.mxu0 0
      %2439 = vmatprep.subr.bf16.mxu0 0
      %2440 = vmatpush1.bf16.msra.mxu0 0
      %2441 = vmatprep.subr.bf16.mxu0 0
      %2442 = vmatpush1.bf16.msra.mxu0 0
      %2443 = vmatprep.subr.bf16.mxu0 0
      %2444 = vmatpush1.bf16.msra.mxu0 0
      %2445 = vmatprep.subr.bf16.mxu0 0
      %2446 = vmatpush1.bf16.msra.mxu0 0
      %2447 = vmatprep.subr.bf16.mxu0 0
      %2448 = vmatpush1.bf16.msra.mxu0 0
      %2449 = vmatprep.subr.bf16.mxu0 0
      %2450 = vmatpush1.bf16.msra.mxu0 0
      %2451 = vmatprep.mubr.bf16.mxu0 0
      %2452 = vmatmul.mubr.bf16.gmra.mrb[0].mxu0 %v2414
      %v2453 = vpop.f32.mrb[0].mxu0
      %v2454 = vadd.f32 0.0, %v2453
      %v2455 = vpop.f32.mrb[0].mxu0
      %v2456 = vadd.f32 0.0, %v2455
      %v2457 = vpop.f32.mrb[0].mxu0
      %v2458 = vadd.f32 0.0, %v2457
      %v2459 = vpop.f32.mrb[0].mxu0
      %v2460 = vadd.f32 0.0, %v2459
      %2461 = vmatprep.mubr.bf16.mxu0 0
      %2462 = vmatmul.mubr.bf16.gmra.mrb[0].mxu0 %v2417
      %v2463 = vpop.f32.mrb[0].mxu0
      %v2464 = vadd.f32 0.0, %v2463
      %v2465 = vpop.f32.mrb[0].mxu0
      %v2466 = vadd.f32 0.0, %v2465
      %v2467 = vpop.f32.mrb[0].mxu0
      %v2468 = vadd.f32 0.0, %v2467
      %v2469 = vpop.f32.mrb[0].mxu0
      %v2470 = vadd.f32 0.0, %v2469
      %2471 = vdwg.mxu0
      %v2472 = vadd.f32 %v2358, %v2454
      %v2473 = vadd.f32 %v2359, %v2456
      %v2474 = vadd.f32 %v2360, %v2458
      %v2475 = vadd.f32 %v2361, %v2460
      %v2476 = vadd.f32 %v2362, %v2464
      %v2477 = vadd.f32 %v2363, %v2466
      %v2478 = vadd.f32 %v2364, %v2468
      %v2479 = vadd.f32 %v2365, %v2470
      %v2480 = vld [vmem:[%s15] sm:$0xff]
      %v2481 = vld [vmem:[%s15 + $0x8] sm:$0xff]
      %v2482 = vld [vmem:[%s15 + $0x10] sm:$0xff]
      %v2483 = vld [vmem:[%s15 + $0x18] sm:$0xff]
      %2485 = vset.pattern.permute.xlu0 0
      %2486 = vperm.xlu0 %2485, %v2480
      %v2487 = vpop.permute.xlu0 %2486
      %2490 = vset.pattern.permute.xlu0 0
      %2491 = vperm.xlu0 %2490, %v2481
      %v2492 = vpop.permute.xlu0 %2491
      %2495 = vset.pattern.permute.xlu0 0
      %2496 = vperm.xlu0 %2495, %v2482
      %v2497 = vpop.permute.xlu0 %2496
      %2500 = vset.pattern.permute.xlu0 0
      %2501 = vperm.xlu0 %2500, %v2483
      %v2502 = vpop.permute.xlu0 %2501
      %v2504 = vadd.f32 %v2472, %v2487
      %v2505 = vadd.f32 %v2473, %v2487
      %v2506 = vadd.f32 %v2474, %v2492
      %v2507 = vadd.f32 %v2475, %v2492
      %v2508 = vadd.f32 %v2476, %v2497
      %v2509 = vadd.f32 %v2477, %v2497
      %v2510 = vadd.f32 %v2478, %v2502
      %v2511 = vadd.f32 %v2479, %v2502
      %2512 = vst [vmem:[%s581] sm:$0xff] %v2504
      %2513 = vst [vmem:[%s581 + $0x8] sm:$0xff] %v2505
      %2514 = vst [vmem:[%s581 + $0x10] sm:$0xff] %v2506
      %2515 = vst [vmem:[%s581 + $0x18] sm:$0xff] %v2507
      %2516 = vst [vmem:[%s581 + $0x20] sm:$0xff] %v2508
      %2517 = vst [vmem:[%s581 + $0x28] sm:$0xff] %v2509
      %2518 = vst [vmem:[%s581 + $0x30] sm:$0xff] %v2510
      %2519 = vst [vmem:[%s581 + $0x38] sm:$0xff] %v2511
      %p2520 = scmp.lt.s32.totalorder %s27, 1
      %s2521 = scalar_select %p2520, %s27, 1
      %s2522 = smul.addr %s2521, 8
      %s2523 = smul.addr %s2522, 8
      %s2524 = scalar_lea.vmem %s16, %s2523
      // Predicated region
      $region85: #{gpg2_forward.1} parent=83 // pred_check
        %p2525 = pneg %p401
      $region86: #{gpg2_forward.1} parent=83 // pred_check_branch
        %2527 = sbr.rel (%p2525) target = $region88
      $region87: #{gpg2_forward.1} parent=83 // pred_region
        _
      $region88: #{gpg2_forward.1} parent=83 // pred_fallthru
        _
    $region84: #{gpg2_forward.1} parent=5 // pred_fallthru
      _
    %p2528 = scmp.le.s32.totalorder 2, %s22
    // Predicated region
    $region89: #{gpg2_forward.1} parent=5 // pred_check
      %p2529 = pneg %p2528
    $region90: #{gpg2_forward.1} parent=5 // pred_check_branch
      %2531 = sbr.rel (%p2529) target = $region92
    $region91: #{gpg2_forward.1} parent=5 // pred_region
      %s2532 = ssub.s32 %s22, 2
      // Predicated region
      $region93: #{gpg2_forward.1} parent=91 // pred_check
        %p2533 = pneg %p407
      $region94: #{gpg2_forward.1} parent=91 // pred_check_branch
        %2535 = sbr.rel (%p2533) target = $region96
      $region95: #{gpg2_forward.1} parent=91 // pred_region
        %p2536 = scmp.lt.s32.totalorder %s28, 1
        %s2537 = scalar_select %p2536, %s28, 1
        %s2538 = smul.addr %s2537, 8
        %s2539 = smul.addr %s2538, 8
        %s2540 = scalar_lea.vmem %s16, %s2539
      $region96: #{gpg2_forward.1} parent=91 // pred_fallthru
        _
    $region92: #{gpg2_forward.1} parent=5 // pred_fallthru
      _
  $region6: #{gpg2_forward.1} parent=0 // loop_footer
    %s26 = sadd.s32 1, %s22
  $region7: #{gpg2_forward.1} parent=0 // loop_footer_branch
    %21 = sbr.rel target = $region3
  $region8: #{gpg2_forward.1} parent=0 // loop_exit
    _

</llo_original>
